<compile_context>
chip_gen: v7x
topology: tpu7x:2x2x1
jax: 0.10.0
libtpu: 0.0.40
codegen_flags: <defaults>
</compile_context>

<pallas_src>
import functools

import jax
import jax.numpy as jnp
from jax.experimental import pallas as pl
from jax.experimental.pallas import tpu as pltpu


def _round_up(x, m):
    return (x + m - 1) // m * m


def _fit_axis(a, axis, new_size):
    """Zero-pad (or slice) `a` along `axis` to `new_size`."""
    cur = a.shape[axis]
    if cur == new_size:
        return a
    if cur > new_size:
        idx = [slice(None)] * a.ndim
        idx[axis] = slice(0, new_size)
        return a[tuple(idx)]
    pad = [(0, 0)] * a.ndim
    pad[axis] = (0, new_size - cur)
    return jnp.pad(a, pad)


def _pad_gates(a, hp, axis):
    """Split the 3H gate axis into (r, z, n) and zero-pad each gate to hp."""
    parts = jnp.split(a, 3, axis=axis)
    return jnp.concatenate([_fit_axis(p, axis, hp) for p in parts], axis=axis)


def _vmem_budget_bytes():
    """Generation-aware scoped-VMEM budget (3/4 of physical per TensorCore)."""
    cap = 128 * 1024 * 1024          # v5e / v6e physical VMEM
    try:
        info = pltpu.get_tpu_info()
        cap = int(getattr(info, "vmem_capacity_bytes", cap))
    except Exception:                # not a TPU device / older API — keep default
        pass
    return (3 * cap) // 4            # ~48 MiB on v7x (64 MiB), ~96 MiB on v5e/v6e


def _choose_ts(seq_len, bp, hp, gi_itemsize, out_itemsize, resident_bytes,
               budget_bytes, ts_max):
    """Largest time chunk (<= ts_max) whose double-buffered blocks fit VMEM."""
    ts = max(1, min(ts_max, seq_len))

    def need(t):
        # Only grid-varying blocks (gi chunk, out chunk) are double-buffered;
        # W_hh^T / b_hn / h0 / h_scr have constant index maps (single buffer).
        return resident_bytes + 2 * t * bp * (3 * hp * gi_itemsize
                                              + hp * out_itemsize)

    while ts > 1 and need(ts) > budget_bytes:
        ts //= 2
    return ts, need(ts)


def _gru_recurrence_kernel(gi_ref, h0_ref, whh_ref, bhn_ref, out_ref, h_scr,
                           *, ts, hp, seq_len, guard_tail):
    """GRU recurrence over one chunk of `ts` time steps.

    gi_ref : (ts, Bp, 3*Hp)  x_t @ W_ih^T + b_ih + [b_hr, b_hz, 0] (gate-major)
    h0_ref : (Bp, Hp)        initial hidden state
    whh_ref: (Hp, 3*Hp)      W_hh^T (gate-major padded, matmul dtype)
    bhn_ref: (1, Hp)         b_hn (added inside r * (gh_n + b_hn))
    out_ref: (ts, Bp, Hp)    per-step hidden outputs for this chunk
    h_scr  : (Bp, Hp) f32    hidden state carried across grid iterations
    """
    c = pl.program_id(0)

    @pl.when(c == 0)
    def _():
        h_scr[...] = h0_ref[...].astype(jnp.float32)

    whh = whh_ref[...]                              # resident; fetched once
    bhn = bhn_ref[...].astype(jnp.float32)          # (1, Hp)

    def gru_step(gi, h):
        # TODO(synk): pin W_hh^T in the MXU across the unrolled time loop via
        #             pltpu.matmul_push_rhs / matmul_acc_lhs / matmul_pop to
        #             avoid re-pushing the RHS on every serial step.
        gh = jnp.dot(h.astype(whh.dtype), whh,
                     preferred_element_type=jnp.float32)        # (Bp, 3Hp) f32
        r = jax.nn.sigmoid(gi[:, 0:hp] + gh[:, 0:hp])
        z = jax.nn.sigmoid(gi[:, hp:2 * hp] + gh[:, hp:2 * hp])
        n = jnp.tanh(gi[:, 2 * hp:] + r * (gh[:, 2 * hp:] + bhn))
        return n + z * (h - n)                      # == (1 - z) * n + z * h

    if not guard_tail:
        # Fast path: every step in this chunk is a real time step.
        def step(t, h):
            h_new = gru_step(gi_ref[t].astype(jnp.float32), h)
            out_ref[t] = h_new.astype(out_ref.dtype)
            return h_new

        h_scr[...] = jax.lax.fori_loop(0, ts, step, h_scr[...], unroll=True)
    else:
        # Tail-guarded path: padded steps skip the serial matmul + EUP work.
        base = c * ts

        def step(t, carry):
            @pl.when(base + t < seq_len)
            def _():
                h_new = gru_step(gi_ref[t].astype(jnp.float32), h_scr[...])
                out_ref[t] = h_new.astype(out_ref.dtype)
                h_scr[...] = h_new
            return carry

        jax.lax.fori_loop(0, ts, step, 0, unroll=True)


def gru_layer(x_tm, h0, w_ih_t, w_hh_t, b_ih, b_hh, *, seq_len,
              matmul_dtype=jnp.bfloat16, ts_max=32):
    """One GRU layer over a (possibly already padded) time-major input.

    x_tm:   (S_in, B_in, D_in)  rows beyond seq_len / real batch are zero padding
    h0:     (B, H)
    w_ih_t: (D, 3H)   w_hh_t: (H, 3H)   b_ih/b_hh: (1, 3H)
    Returns out_p: (Sp, Bp, Hp) padded per-step hidden states (dtype of x_tm);
    real data lives at [:seq_len, :B, :H].
    """
    s_in, b_in, d_in = x_tm.shape
    B, H = h0.shape
    out_dtype = x_tm.dtype
    md = jnp.dtype(x_tm.dtype if matmul_dtype is None else matmul_dtype)

    Bp = _round_up(max(b_in, B), 8)      # sublane multiple
    Hp = _round_up(H, 128)               # lane multiple -> gate slices stay aligned

    # --- gate-major padded parameters (padded BEFORE the big matmul) ----------
    w_ih_p = _fit_axis(_pad_gates(w_ih_t, Hp, axis=1), 0, d_in).astype(md)  # (D_in, 3Hp)
    w_hh_p = _fit_axis(_pad_gates(w_hh_t, Hp, axis=1), 0, Hp).astype(md)    # (Hp, 3Hp)
    # Fold b_hr / b_hz into the hoisted projection; b_hn stays separate.
    b_fold = b_ih + jnp.concatenate(
        [b_hh[:, :H], b_hh[:, H:2 * H], jnp.zeros_like(b_hh[:, :H])], axis=1)
    b_fold_p = _pad_gates(b_fold, Hp, axis=1).astype(jnp.float32)           # (1, 3Hp)
    b_hn_p = _fit_axis(b_hh[:, 2 * H:], 1, Hp).astype(jnp.float32)          # (1, Hp)
    h0_p = _fit_axis(_fit_axis(h0, 1, Hp), 0, Bp)                           # (Bp, Hp)

    # --- time chunk from the generation-aware VMEM budget ---------------------
    gi_itemsize = md.itemsize
    out_itemsize = jnp.dtype(out_dtype).itemsize
    resident = (Hp * 3 * Hp * gi_itemsize                 # W_hh^T (resident)
                + Hp * 4                                  # b_hn (f32)
                + Bp * Hp * jnp.dtype(h0.dtype).itemsize  # h0
                + Bp * Hp * 4)                            # h_scr (f32)
    budget = _vmem_budget_bytes()
    ts, need = _choose_ts(seq_len, Bp, Hp, gi_itemsize, out_itemsize,
                          resident, budget, ts_max)
    # TODO(synk): if `resident` alone approaches `budget` (very large H), tile
    #             the 3H axis of W_hh^T per step instead of keeping it resident.
    Sp = _round_up(seq_len, ts)
    guard_tail = Sp != seq_len

    # --- hoisted input projection: one well-shaped MXU matmul outside the
    #     serial chain; gi comes out gate-major / lane-dense directly. --------
    x_p = _fit_axis(_fit_axis(x_tm, 0, Sp), 1, Bp)                          # (Sp, Bp, D)
    gi = jnp.dot(x_p.reshape(Sp * Bp, d_in).astype(md), w_ih_p,
                 preferred_element_type=jnp.float32)
    gi = (gi + b_fold_p).astype(md).reshape(Sp, Bp, 3 * Hp)

    kernel = functools.partial(_gru_recurrence_kernel, ts=ts, hp=Hp,
                               seq_len=seq_len, guard_tail=guard_tail)

    vmem_limit = int(min(budget, max(need + (4 << 20), 32 << 20)))

    out_p = pl.pallas_call(
        kernel,
        out_shape=jax.ShapeDtypeStruct((Sp, Bp, Hp), out_dtype),
        grid_spec=pltpu.PrefetchScalarGridSpec(
            num_scalar_prefetch=0,
            grid=(Sp // ts,),
            in_specs=[
                pl.BlockSpec((ts, Bp, 3 * Hp), lambda c: (c, 0, 0)),  # gi chunk
                pl.BlockSpec((Bp, Hp), lambda c: (0, 0)),             # h0
                pl.BlockSpec((Hp, 3 * Hp), lambda c: (0, 0)),         # W_hh^T
                pl.BlockSpec((1, Hp), lambda c: (0, 0)),              # b_hn
            ],
            out_specs=pl.BlockSpec((ts, Bp, Hp), lambda c: (c, 0, 0)),
            scratch_shapes=[pltpu.VMEM((Bp, Hp), jnp.float32)],
        ),
        compiler_params=pltpu.CompilerParams(
            dimension_semantics=("arbitrary",),   # time recurrence is serial
            vmem_limit_bytes=vmem_limit,
        ),
    )(gi, h0_p, w_hh_p, b_hn_p)

    return out_p


def decoder_forward(x, hidden, params, *, matmul_dtype=jnp.bfloat16, ts_max=32):
    """Equivalent of Decoder.forward(x, hidden) (nn.GRU, batch_first=True, eval).

    x:      (B, S, input_size)
    hidden: (num_layers, B, H)
    params: per-layer dicts with 'w_ih_t' (D,3H), 'w_hh_t' (H,3H), 'b_ih', 'b_hh' (1,3H)
    returns (output (B, S, H), hidden (num_layers, B, H))
    """
    B, S, _ = x.shape
    H = hidden.shape[-1]
    x_tm = jnp.transpose(x, (1, 0, 2))            # (S, B, D) time-major
    layer_in = x_tm
    finals = []
    for l, p in enumerate(params):
        # TODO(synk): nn.GRU inter-layer dropout (p=0.2) is training-only;
        #             eval-mode (no dropout) semantics implemented.
        out_p = gru_layer(layer_in, hidden[l], p["w_ih_t"], p["w_hh_t"],
                          p["b_ih"], p["b_hh"], seq_len=S,
                          matmul_dtype=matmul_dtype, ts_max=ts_max)
        finals.append(out_p[S - 1, :B, :H])       # final hidden == last real step
        layer_in = out_p                          # stays padded: no re-pad between layers
    # TODO(synk): wavefront-fuse the layer loop into one kernel (and map layers
    #             onto the two v7x TensorCores via pl.core_map) to raise MXU
    #             occupancy and remove inter-layer HBM round trips entirely.
    output = jnp.transpose(layer_in[:S, :B, :H], (1, 0, 2))   # (B, S, H)
    h_n = jnp.stack(finals, axis=0)                           # (L, B, H)
    return output, h_n


def init_gru_params(key, input_size, hidden_size, num_layers, dtype=jnp.float32):
    """Deterministic nn.GRU-style init: U(-1/sqrt(H), 1/sqrt(H))."""
    k = 1.0 / jnp.sqrt(hidden_size)
    params = []
    for l in range(num_layers):
        d_in = input_size if l == 0 else hidden_size
        key, k1, k2, k3, k4 = jax.random.split(key, 5)
        w_ih = jax.random.uniform(k1, (3 * hidden_size, d_in), dtype, -k, k)
        w_hh = jax.random.uniform(k2, (3 * hidden_size, hidden_size), dtype, -k, k)
        b_ih = jax.random.uniform(k3, (3 * hidden_size,), dtype, -k, k)
        b_hh = jax.random.uniform(k4, (3 * hidden_size,), dtype, -k, k)
        params.append({
            "w_ih_t": jnp.transpose(w_ih),            # (D_in, 3H)
            "w_hh_t": jnp.transpose(w_hh),            # (H, 3H)
            "b_ih": b_ih.reshape(1, 3 * hidden_size),
            "b_hh": b_hh.reshape(1, 3 * hidden_size),
        })
    return params


def decoder_forward_ref(x, hidden, params):
    """Pure-JAX reference (lax.scan, f32) for correctness checking."""
    x_tm = jnp.transpose(x, (1, 0, 2))
    finals = []
    layer_in = x_tm
    for l, p in enumerate(params):
        H = hidden.shape[-1]

        def step(h, x_t, p=p, H=H):
            gi = x_t @ p["w_ih_t"] + p["b_ih"]
            gh = h @ p["w_hh_t"] + p["b_hh"]
            r = jax.nn.sigmoid(gi[:, :H] + gh[:, :H])
            z = jax.nn.sigmoid(gi[:, H:2 * H] + gh[:, H:2 * H])
            n = jnp.tanh(gi[:, 2 * H:] + r * gh[:, 2 * H:])
            h_new = (1.0 - z) * n + z * h
            return h_new, h_new

        h_fin, out_tm = jax.lax.scan(step, hidden[l], layer_in)
        finals.append(h_fin)
        layer_in = out_tm
    return jnp.transpose(layer_in, (1, 0, 2)), jnp.stack(finals, axis=0)


if __name__ == "__main__":
    B, S, D, H, L = 2, 8, 16, 32, 2   # batch, seq, input_size, hidden_size, layers

    key = jax.random.PRNGKey(0)
    key, kx, kh, kp = jax.random.split(key, 4)
    x = jax.random.normal(kx, (B, S, D), jnp.float32)
    h0 = jax.random.normal(kh, (L, B, H), jnp.float32)
    params = init_gru_params(kp, D, H, L)

    # Default bf16 MXU path for the serial recurrence matmul (f32 accumulation).
    out_bf16, hn_bf16 = decoder_forward(x, h0, params)
    out_bf16 = jax.block_until_ready(out_bf16)
    hn_bf16 = jax.block_until_ready(hn_bf16)

    # f32 matmul path: bit-faithful to the PyTorch eval-mode semantics.
    out_f32, hn_f32 = decoder_forward(x, h0, params, matmul_dtype=jnp.float32)
    out_f32 = jax.block_until_ready(out_f32)
    hn_f32 = jax.block_until_ready(hn_f32)

    out_ref, hn_ref = decoder_forward_ref(x, h0, params)

    assert out_f32.shape == (B, S, H) and hn_f32.shape == (L, B, H)
    assert out_bf16.shape == (B, S, H) and hn_bf16.shape == (L, B, H)
    assert jnp.allclose(out_f32, out_ref, atol=1e-4, rtol=1e-4)
    assert jnp.allclose(hn_f32, hn_ref, atol=1e-4, rtol=1e-4)
    # bf16 MXU operands (f32 accumulation) -> looser tolerance vs. f32 reference.
    assert jnp.allclose(out_bf16, out_ref, atol=5e-2, rtol=5e-2)
    assert jnp.allclose(hn_bf16, hn_ref, atol=5e-2, rtol=5e-2)

    print("KERNEL_OK")
</pallas_src>

<mosaic_0001>
module attributes {stable_mosaic.version = 11 : i64} {
  func.func @_gru_recurrence_kernel(%arg0: i32, %arg1: memref<8x8x384xbf16, #tpu.memory_space<vmem>>, %arg2: memref<8x128xf32, #tpu.memory_space<vmem>>, %arg3: memref<128x384xbf16, #tpu.memory_space<vmem>>, %arg4: memref<1x128xf32, #tpu.memory_space<vmem>>, %arg5: memref<8x8x128xf32, #tpu.memory_space<vmem>>, %arg6: memref<8x128xf32, #tpu.memory_space<vmem>>) attributes {dimension_semantics = [#tpu.dimension_semantics<arbitrary>], iteration_bounds = array<i64: 1>, scalar_prefetch = 0 : i64, scratch_operands = 1 : i64, tpu.core_type = #tpu.core_type<tc>, window_params = [{transform_indices = @transform_0, window_bounds = array<i64: 8, 8, 384>}, {pipeline_mode = #tpu.pipeline_mode<synchronous>, transform_indices = @transform_1, window_bounds = array<i64: 8, 128>}, {pipeline_mode = #tpu.pipeline_mode<synchronous>, transform_indices = @transform_2, window_bounds = array<i64: 128, 384>}, {pipeline_mode = #tpu.pipeline_mode<synchronous>, transform_indices = @transform_3, window_bounds = array<i64: 1, 128>}, {transform_indices = @transform_4, window_bounds = array<i64: 8, 8, 128>}]} {
    %c0_i32 = arith.constant 0 : i32
    %0 = arith.cmpi eq, %arg0, %c0_i32 : i32
    %1 = arith.extui %0 : i1 to i32
    %c0_i32_0 = arith.constant 0 : i32
    %2 = arith.cmpi ne, %1, %c0_i32_0 : i32
    scf.if %2 {
      %c0_64 = arith.constant 0 : index
      %c0_65 = arith.constant 0 : index
      %295 = vector.load %arg2[%c0_64, %c0_65] : memref<8x128xf32, #tpu.memory_space<vmem>>, vector<8x128xf32>
      %c0_66 = arith.constant 0 : index
      %c0_67 = arith.constant 0 : index
      %296 = vector.load %arg6[%c0_66, %c0_67] : memref<8x128xf32, #tpu.memory_space<vmem>>, vector<8x128xf32>
      tpu.vector_store %arg6[%c0_66, %c0_67], %295 {strides = array<i32>} : memref<8x128xf32, #tpu.memory_space<vmem>>, vector<8x128xf32>,
    } else {
    }
    %c0 = arith.constant 0 : index
    %c0_1 = arith.constant 0 : index
    %3 = vector.load %arg3[%c0, %c0_1] : memref<128x384xbf16, #tpu.memory_space<vmem>>, vector<128x384xbf16>
    %c0_2 = arith.constant 0 : index
    %c0_3 = arith.constant 0 : index
    %4 = vector.load %arg4[%c0_2, %c0_3] : memref<1x128xf32, #tpu.memory_space<vmem>>, vector<1x128xf32>
    %c0_4 = arith.constant 0 : index
    %c0_5 = arith.constant 0 : index
    %5 = vector.load %arg6[%c0_4, %c0_5] : memref<8x128xf32, #tpu.memory_space<vmem>>, vector<8x128xf32>
    %c0_i32_6 = arith.constant 0 : i32
    %6 = arith.index_cast %c0_i32_6 : i32 to index
    %c0_7 = arith.constant 0 : index
    %c0_8 = arith.constant 0 : index
    %7 = vector.load %arg1[%6, %c0_7, %c0_8] : memref<8x8x384xbf16, #tpu.memory_space<vmem>>, vector<1x8x384xbf16>
    %8 = vector.shape_cast %7 : vector<1x8x384xbf16> to vector<8x384xbf16>
    %9 = arith.extf %8 : vector<8x384xbf16> to vector<8x384xf32>
    %10 = arith.truncf %5 : vector<8x128xf32> to vector<8x128xbf16>
    %cst = arith.constant dense<0.000000e+00> : vector<8x384xf32>
    %11 = tpu.matmul %10, %3, %cst {dimension_numbers = #tpu.dot_dimension_numbers<[1], [0], [0], [1], [0, 0, 1, 1], [], []>} : vector<8x128xbf16>, vector<128x384xbf16>, vector<8x384xf32> -> vector<8x384xf32>
    %12 = vector.extract_strided_slice %9 {offsets = [0, 0], sizes = [8, 128], strides = [1, 1]} : vector<8x384xf32> to vector<8x128xf32>
    %13 = vector.extract_strided_slice %11 {offsets = [0, 0], sizes = [8, 128], strides = [1, 1]} : vector<8x384xf32> to vector<8x128xf32>
    %14 = arith.addf %12, %13 : vector<8x128xf32>
    %15 = arith.negf %14 : vector<8x128xf32>
    %16 = math.exp %15 : vector<8x128xf32>
    %cst_9 = arith.constant 1.000000e+00 : f32
    %17 = vector.broadcast %cst_9 : f32 to vector<8x128xf32>
    %18 = arith.addf %17, %16 : vector<8x128xf32>
    %19 = arith.divf %17, %18 : vector<8x128xf32>
    %20 = vector.extract_strided_slice %9 {offsets = [0, 128], sizes = [8, 128], strides = [1, 1]} : vector<8x384xf32> to vector<8x128xf32>
    %21 = vector.extract_strided_slice %11 {offsets = [0, 128], sizes = [8, 128], strides = [1, 1]} : vector<8x384xf32> to vector<8x128xf32>
    %22 = arith.addf %20, %21 : vector<8x128xf32>
    %23 = arith.negf %22 : vector<8x128xf32>
    %24 = math.exp %23 : vector<8x128xf32>
    %cst_10 = arith.constant 1.000000e+00 : f32
    %25 = vector.broadcast %cst_10 : f32 to vector<8x128xf32>
    %26 = arith.addf %25, %24 : vector<8x128xf32>
    %27 = arith.divf %25, %26 : vector<8x128xf32>
    %28 = vector.extract_strided_slice %9 {offsets = [0, 256], sizes = [8, 128], strides = [1, 1]} : vector<8x384xf32> to vector<8x128xf32>
    %29 = vector.extract_strided_slice %11 {offsets = [0, 256], sizes = [8, 128], strides = [1, 1]} : vector<8x384xf32> to vector<8x128xf32>
    %30 = vector.broadcast %4 : vector<1x128xf32> to vector<8x128xf32>
    %31 = arith.addf %29, %30 : vector<8x128xf32>
    %32 = arith.mulf %19, %31 : vector<8x128xf32>
    %33 = arith.addf %28, %32 : vector<8x128xf32>
    %34 = math.tanh %33 : vector<8x128xf32>
    %35 = arith.subf %5, %34 : vector<8x128xf32>
    %36 = arith.mulf %27, %35 : vector<8x128xf32>
    %37 = arith.addf %34, %36 : vector<8x128xf32>
    %38 = arith.index_cast %c0_i32_6 : i32 to index
    %c0_11 = arith.constant 0 : index
    %c0_12 = arith.constant 0 : index
    %39 = vector.load %arg5[%38, %c0_11, %c0_12] : memref<8x8x128xf32, #tpu.memory_space<vmem>>, vector<1x8x128xf32>
    %40 = vector.shape_cast %39 : vector<1x8x128xf32> to vector<8x128xf32>
    %41 = vector.shape_cast %37 : vector<8x128xf32> to vector<1x8x128xf32>
    tpu.vector_store %arg5[%38, %c0_11, %c0_12], %41 {strides = array<i32>} : memref<8x8x128xf32, #tpu.memory_space<vmem>>, vector<1x8x128xf32>,
    %c1_i32 = arith.constant 1 : i32
    %42 = arith.index_cast %c1_i32 : i32 to index
    %c0_13 = arith.constant 0 : index
    %c0_14 = arith.constant 0 : index
    %43 = vector.load %arg1[%42, %c0_13, %c0_14] : memref<8x8x384xbf16, #tpu.memory_space<vmem>>, vector<1x8x384xbf16>
    %44 = vector.shape_cast %43 : vector<1x8x384xbf16> to vector<8x384xbf16>
    %45 = arith.extf %44 : vector<8x384xbf16> to vector<8x384xf32>
    %46 = arith.truncf %37 : vector<8x128xf32> to vector<8x128xbf16>
    %cst_15 = arith.constant dense<0.000000e+00> : vector<8x384xf32>
    %47 = tpu.matmul %46, %3, %cst_15 {dimension_numbers = #tpu.dot_dimension_numbers<[1], [0], [0], [1], [0, 0, 1, 1], [], []>} : vector<8x128xbf16>, vector<128x384xbf16>, vector<8x384xf32> -> vector<8x384xf32>
    %48 = vector.extract_strided_slice %45 {offsets = [0, 0], sizes = [8, 128], strides = [1, 1]} : vector<8x384xf32> to vector<8x128xf32>
    %49 = vector.extract_strided_slice %47 {offsets = [0, 0], sizes = [8, 128], strides = [1, 1]} : vector<8x384xf32> to vector<8x128xf32>
    %50 = arith.addf %48, %49 : vector<8x128xf32>
    %51 = arith.negf %50 : vector<8x128xf32>
    %52 = math.exp %51 : vector<8x128xf32>
    %cst_16 = arith.constant 1.000000e+00 : f32
    %53 = vector.broadcast %cst_16 : f32 to vector<8x128xf32>
    %54 = arith.addf %53, %52 : vector<8x128xf32>
    %55 = arith.divf %53, %54 : vector<8x128xf32>
    %56 = vector.extract_strided_slice %45 {offsets = [0, 128], sizes = [8, 128], strides = [1, 1]} : vector<8x384xf32> to vector<8x128xf32>
    %57 = vector.extract_strided_slice %47 {offsets = [0, 128], sizes = [8, 128], strides = [1, 1]} : vector<8x384xf32> to vector<8x128xf32>
    %58 = arith.addf %56, %57 : vector<8x128xf32>
    %59 = arith.negf %58 : vector<8x128xf32>
    %60 = math.exp %59 : vector<8x128xf32>
    %cst_17 = arith.constant 1.000000e+00 : f32
    %61 = vector.broadcast %cst_17 : f32 to vector<8x128xf32>
    %62 = arith.addf %61, %60 : vector<8x128xf32>
    %63 = arith.divf %61, %62 : vector<8x128xf32>
    %64 = vector.extract_strided_slice %45 {offsets = [0, 256], sizes = [8, 128], strides = [1, 1]} : vector<8x384xf32> to vector<8x128xf32>
    %65 = vector.extract_strided_slice %47 {offsets = [0, 256], sizes = [8, 128], strides = [1, 1]} : vector<8x384xf32> to vector<8x128xf32>
    %66 = vector.broadcast %4 : vector<1x128xf32> to vector<8x128xf32>
    %67 = arith.addf %65, %66 : vector<8x128xf32>
    %68 = arith.mulf %55, %67 : vector<8x128xf32>
    %69 = arith.addf %64, %68 : vector<8x128xf32>
    %70 = math.tanh %69 : vector<8x128xf32>
    %71 = arith.subf %37, %70 : vector<8x128xf32>
    %72 = arith.mulf %63, %71 : vector<8x128xf32>
    %73 = arith.addf %70, %72 : vector<8x128xf32>
    %74 = arith.index_cast %c1_i32 : i32 to index
    %c0_18 = arith.constant 0 : index
    %c0_19 = arith.constant 0 : index
    %75 = vector.load %arg5[%74, %c0_18, %c0_19] : memref<8x8x128xf32, #tpu.memory_space<vmem>>, vector<1x8x128xf32>
    %76 = vector.shape_cast %75 : vector<1x8x128xf32> to vector<8x128xf32>
    %77 = vector.shape_cast %73 : vector<8x128xf32> to vector<1x8x128xf32>
    tpu.vector_store %arg5[%74, %c0_18, %c0_19], %77 {strides = array<i32>} : memref<8x8x128xf32, #tpu.memory_space<vmem>>, vector<1x8x128xf32>,
    %c2_i32 = arith.constant 2 : i32
    %78 = arith.index_cast %c2_i32 : i32 to index
    %c0_20 = arith.constant 0 : index
    %c0_21 = arith.constant 0 : index
    %79 = vector.load %arg1[%78, %c0_20, %c0_21] : memref<8x8x384xbf16, #tpu.memory_space<vmem>>, vector<1x8x384xbf16>
    %80 = vector.shape_cast %79 : vector<1x8x384xbf16> to vector<8x384xbf16>
    %81 = arith.extf %80 : vector<8x384xbf16> to vector<8x384xf32>
    %82 = arith.truncf %73 : vector<8x128xf32> to vector<8x128xbf16>
    %cst_22 = arith.constant dense<0.000000e+00> : vector<8x384xf32>
    %83 = tpu.matmul %82, %3, %cst_22 {dimension_numbers = #tpu.dot_dimension_numbers<[1], [0], [0], [1], [0, 0, 1, 1], [], []>} : vector<8x128xbf16>, vector<128x384xbf16>, vector<8x384xf32> -> vector<8x384xf32>
    %84 = vector.extract_strided_slice %81 {offsets = [0, 0], sizes = [8, 128], strides = [1, 1]} : vector<8x384xf32> to vector<8x128xf32>
    %85 = vector.extract_strided_slice %83 {offsets = [0, 0], sizes = [8, 128], strides = [1, 1]} : vector<8x384xf32> to vector<8x128xf32>
    %86 = arith.addf %84, %85 : vector<8x128xf32>
    %87 = arith.negf %86 : vector<8x128xf32>
    %88 = math.exp %87 : vector<8x128xf32>
    %cst_23 = arith.constant 1.000000e+00 : f32
    %89 = vector.broadcast %cst_23 : f32 to vector<8x128xf32>
    %90 = arith.addf %89, %88 : vector<8x128xf32>
    %91 = arith.divf %89, %90 : vector<8x128xf32>
    %92 = vector.extract_strided_slice %81 {offsets = [0, 128], sizes = [8, 128], strides = [1, 1]} : vector<8x384xf32> to vector<8x128xf32>
    %93 = vector.extract_strided_slice %83 {offsets = [0, 128], sizes = [8, 128], strides = [1, 1]} : vector<8x384xf32> to vector<8x128xf32>
    %94 = arith.addf %92, %93 : vector<8x128xf32>
    %95 = arith.negf %94 : vector<8x128xf32>
    %96 = math.exp %95 : vector<8x128xf32>
    %cst_24 = arith.constant 1.000000e+00 : f32
    %97 = vector.broadcast %cst_24 : f32 to vector<8x128xf32>
    %98 = arith.addf %97, %96 : vector<8x128xf32>
    %99 = arith.divf %97, %98 : vector<8x128xf32>
    %100 = vector.extract_strided_slice %81 {offsets = [0, 256], sizes = [8, 128], strides = [1, 1]} : vector<8x384xf32> to vector<8x128xf32>
    %101 = vector.extract_strided_slice %83 {offsets = [0, 256], sizes = [8, 128], strides = [1, 1]} : vector<8x384xf32> to vector<8x128xf32>
    %102 = vector.broadcast %4 : vector<1x128xf32> to vector<8x128xf32>
    %103 = arith.addf %101, %102 : vector<8x128xf32>
    %104 = arith.mulf %91, %103 : vector<8x128xf32>
    %105 = arith.addf %100, %104 : vector<8x128xf32>
    %106 = math.tanh %105 : vector<8x128xf32>
    %107 = arith.subf %73, %106 : vector<8x128xf32>
    %108 = arith.mulf %99, %107 : vector<8x128xf32>
    %109 = arith.addf %106, %108 : vector<8x128xf32>
    %110 = arith.index_cast %c2_i32 : i32 to index
    %c0_25 = arith.constant 0 : index
    %c0_26 = arith.constant 0 : index
    %111 = vector.load %arg5[%110, %c0_25, %c0_26] : memref<8x8x128xf32, #tpu.memory_space<vmem>>, vector<1x8x128xf32>
    %112 = vector.shape_cast %111 : vector<1x8x128xf32> to vector<8x128xf32>
    %113 = vector.shape_cast %109 : vector<8x128xf32> to vector<1x8x128xf32>
    tpu.vector_store %arg5[%110, %c0_25, %c0_26], %113 {strides = array<i32>} : memref<8x8x128xf32, #tpu.memory_space<vmem>>, vector<1x8x128xf32>,
    %c3_i32 = arith.constant 3 : i32
    %114 = arith.index_cast %c3_i32 : i32 to index
    %c0_27 = arith.constant 0 : index
    %c0_28 = arith.constant 0 : index
    %115 = vector.load %arg1[%114, %c0_27, %c0_28] : memref<8x8x384xbf16, #tpu.memory_space<vmem>>, vector<1x8x384xbf16>
    %116 = vector.shape_cast %115 : vector<1x8x384xbf16> to vector<8x384xbf16>
    %117 = arith.extf %116 : vector<8x384xbf16> to vector<8x384xf32>
    %118 = arith.truncf %109 : vector<8x128xf32> to vector<8x128xbf16>
    %cst_29 = arith.constant dense<0.000000e+00> : vector<8x384xf32>
    %119 = tpu.matmul %118, %3, %cst_29 {dimension_numbers = #tpu.dot_dimension_numbers<[1], [0], [0], [1], [0, 0, 1, 1], [], []>} : vector<8x128xbf16>, vector<128x384xbf16>, vector<8x384xf32> -> vector<8x384xf32>
    %120 = vector.extract_strided_slice %117 {offsets = [0, 0], sizes = [8, 128], strides = [1, 1]} : vector<8x384xf32> to vector<8x128xf32>
    %121 = vector.extract_strided_slice %119 {offsets = [0, 0], sizes = [8, 128], strides = [1, 1]} : vector<8x384xf32> to vector<8x128xf32>
    %122 = arith.addf %120, %121 : vector<8x128xf32>
    %123 = arith.negf %122 : vector<8x128xf32>
    %124 = math.exp %123 : vector<8x128xf32>
    %cst_30 = arith.constant 1.000000e+00 : f32
    %125 = vector.broadcast %cst_30 : f32 to vector<8x128xf32>
    %126 = arith.addf %125, %124 : vector<8x128xf32>
    %127 = arith.divf %125, %126 : vector<8x128xf32>
    %128 = vector.extract_strided_slice %117 {offsets = [0, 128], sizes = [8, 128], strides = [1, 1]} : vector<8x384xf32> to vector<8x128xf32>
    %129 = vector.extract_strided_slice %119 {offsets = [0, 128], sizes = [8, 128], strides = [1, 1]} : vector<8x384xf32> to vector<8x128xf32>
    %130 = arith.addf %128, %129 : vector<8x128xf32>
    %131 = arith.negf %130 : vector<8x128xf32>
    %132 = math.exp %131 : vector<8x128xf32>
    %cst_31 = arith.constant 1.000000e+00 : f32
    %133 = vector.broadcast %cst_31 : f32 to vector<8x128xf32>
    %134 = arith.addf %133, %132 : vector<8x128xf32>
    %135 = arith.divf %133, %134 : vector<8x128xf32>
    %136 = vector.extract_strided_slice %117 {offsets = [0, 256], sizes = [8, 128], strides = [1, 1]} : vector<8x384xf32> to vector<8x128xf32>
    %137 = vector.extract_strided_slice %119 {offsets = [0, 256], sizes = [8, 128], strides = [1, 1]} : vector<8x384xf32> to vector<8x128xf32>
    %138 = vector.broadcast %4 : vector<1x128xf32> to vector<8x128xf32>
    %139 = arith.addf %137, %138 : vector<8x128xf32>
    %140 = arith.mulf %127, %139 : vector<8x128xf32>
    %141 = arith.addf %136, %140 : vector<8x128xf32>
    %142 = math.tanh %141 : vector<8x128xf32>
    %143 = arith.subf %109, %142 : vector<8x128xf32>
    %144 = arith.mulf %135, %143 : vector<8x128xf32>
    %145 = arith.addf %142, %144 : vector<8x128xf32>
    %146 = arith.index_cast %c3_i32 : i32 to index
    %c0_32 = arith.constant 0 : index
    %c0_33 = arith.constant 0 : index
    %147 = vector.load %arg5[%146, %c0_32, %c0_33] : memref<8x8x128xf32, #tpu.memory_space<vmem>>, vector<1x8x128xf32>
    %148 = vector.shape_cast %147 : vector<1x8x128xf32> to vector<8x128xf32>
    %149 = vector.shape_cast %145 : vector<8x128xf32> to vector<1x8x128xf32>
    tpu.vector_store %arg5[%146, %c0_32, %c0_33], %149 {strides = array<i32>} : memref<8x8x128xf32, #tpu.memory_space<vmem>>, vector<1x8x128xf32>,
    %c4_i32 = arith.constant 4 : i32
    %150 = arith.index_cast %c4_i32 : i32 to index
    %c0_34 = arith.constant 0 : index
    %c0_35 = arith.constant 0 : index
    %151 = vector.load %arg1[%150, %c0_34, %c0_35] : memref<8x8x384xbf16, #tpu.memory_space<vmem>>, vector<1x8x384xbf16>
    %152 = vector.shape_cast %151 : vector<1x8x384xbf16> to vector<8x384xbf16>
    %153 = arith.extf %152 : vector<8x384xbf16> to vector<8x384xf32>
    %154 = arith.truncf %145 : vector<8x128xf32> to vector<8x128xbf16>
    %cst_36 = arith.constant dense<0.000000e+00> : vector<8x384xf32>
    %155 = tpu.matmul %154, %3, %cst_36 {dimension_numbers = #tpu.dot_dimension_numbers<[1], [0], [0], [1], [0, 0, 1, 1], [], []>} : vector<8x128xbf16>, vector<128x384xbf16>, vector<8x384xf32> -> vector<8x384xf32>
    %156 = vector.extract_strided_slice %153 {offsets = [0, 0], sizes = [8, 128], strides = [1, 1]} : vector<8x384xf32> to vector<8x128xf32>
    %157 = vector.extract_strided_slice %155 {offsets = [0, 0], sizes = [8, 128], strides = [1, 1]} : vector<8x384xf32> to vector<8x128xf32>
    %158 = arith.addf %156, %157 : vector<8x128xf32>
    %159 = arith.negf %158 : vector<8x128xf32>
    %160 = math.exp %159 : vector<8x128xf32>
    %cst_37 = arith.constant 1.000000e+00 : f32
    %161 = vector.broadcast %cst_37 : f32 to vector<8x128xf32>
    %162 = arith.addf %161, %160 : vector<8x128xf32>
    %163 = arith.divf %161, %162 : vector<8x128xf32>
    %164 = vector.extract_strided_slice %153 {offsets = [0, 128], sizes = [8, 128], strides = [1, 1]} : vector<8x384xf32> to vector<8x128xf32>
    %165 = vector.extract_strided_slice %155 {offsets = [0, 128], sizes = [8, 128], strides = [1, 1]} : vector<8x384xf32> to vector<8x128xf32>
    %166 = arith.addf %164, %165 : vector<8x128xf32>
    %167 = arith.negf %166 : vector<8x128xf32>
    %168 = math.exp %167 : vector<8x128xf32>
    %cst_38 = arith.constant 1.000000e+00 : f32
    %169 = vector.broadcast %cst_38 : f32 to vector<8x128xf32>
    %170 = arith.addf %169, %168 : vector<8x128xf32>
    %171 = arith.divf %169, %170 : vector<8x128xf32>
    %172 = vector.extract_strided_slice %153 {offsets = [0, 256], sizes = [8, 128], strides = [1, 1]} : vector<8x384xf32> to vector<8x128xf32>
    %173 = vector.extract_strided_slice %155 {offsets = [0, 256], sizes = [8, 128], strides = [1, 1]} : vector<8x384xf32> to vector<8x128xf32>
    %174 = vector.broadcast %4 : vector<1x128xf32> to vector<8x128xf32>
    %175 = arith.addf %173, %174 : vector<8x128xf32>
    %176 = arith.mulf %163, %175 : vector<8x128xf32>
    %177 = arith.addf %172, %176 : vector<8x128xf32>
    %178 = math.tanh %177 : vector<8x128xf32>
    %179 = arith.subf %145, %178 : vector<8x128xf32>
    %180 = arith.mulf %171, %179 : vector<8x128xf32>
    %181 = arith.addf %178, %180 : vector<8x128xf32>
    %182 = arith.index_cast %c4_i32 : i32 to index
    %c0_39 = arith.constant 0 : index
    %c0_40 = arith.constant 0 : index
    %183 = vector.load %arg5[%182, %c0_39, %c0_40] : memref<8x8x128xf32, #tpu.memory_space<vmem>>, vector<1x8x128xf32>
    %184 = vector.shape_cast %183 : vector<1x8x128xf32> to vector<8x128xf32>
    %185 = vector.shape_cast %181 : vector<8x128xf32> to vector<1x8x128xf32>
    tpu.vector_store %arg5[%182, %c0_39, %c0_40], %185 {strides = array<i32>} : memref<8x8x128xf32, #tpu.memory_space<vmem>>, vector<1x8x128xf32>,
    %c5_i32 = arith.constant 5 : i32
    %186 = arith.index_cast %c5_i32 : i32 to index
    %c0_41 = arith.constant 0 : index
    %c0_42 = arith.constant 0 : index
    %187 = vector.load %arg1[%186, %c0_41, %c0_42] : memref<8x8x384xbf16, #tpu.memory_space<vmem>>, vector<1x8x384xbf16>
    %188 = vector.shape_cast %187 : vector<1x8x384xbf16> to vector<8x384xbf16>
    %189 = arith.extf %188 : vector<8x384xbf16> to vector<8x384xf32>
    %190 = arith.truncf %181 : vector<8x128xf32> to vector<8x128xbf16>
    %cst_43 = arith.constant dense<0.000000e+00> : vector<8x384xf32>
    %191 = tpu.matmul %190, %3, %cst_43 {dimension_numbers = #tpu.dot_dimension_numbers<[1], [0], [0], [1], [0, 0, 1, 1], [], []>} : vector<8x128xbf16>, vector<128x384xbf16>, vector<8x384xf32> -> vector<8x384xf32>
    %192 = vector.extract_strided_slice %189 {offsets = [0, 0], sizes = [8, 128], strides = [1, 1]} : vector<8x384xf32> to vector<8x128xf32>
    %193 = vector.extract_strided_slice %191 {offsets = [0, 0], sizes = [8, 128], strides = [1, 1]} : vector<8x384xf32> to vector<8x128xf32>
    %194 = arith.addf %192, %193 : vector<8x128xf32>
    %195 = arith.negf %194 : vector<8x128xf32>
    %196 = math.exp %195 : vector<8x128xf32>
    %cst_44 = arith.constant 1.000000e+00 : f32
    %197 = vector.broadcast %cst_44 : f32 to vector<8x128xf32>
    %198 = arith.addf %197, %196 : vector<8x128xf32>
    %199 = arith.divf %197, %198 : vector<8x128xf32>
    %200 = vector.extract_strided_slice %189 {offsets = [0, 128], sizes = [8, 128], strides = [1, 1]} : vector<8x384xf32> to vector<8x128xf32>
    %201 = vector.extract_strided_slice %191 {offsets = [0, 128], sizes = [8, 128], strides = [1, 1]} : vector<8x384xf32> to vector<8x128xf32>
    %202 = arith.addf %200, %201 : vector<8x128xf32>
    %203 = arith.negf %202 : vector<8x128xf32>
    %204 = math.exp %203 : vector<8x128xf32>
    %cst_45 = arith.constant 1.000000e+00 : f32
    %205 = vector.broadcast %cst_45 : f32 to vector<8x128xf32>
    %206 = arith.addf %205, %204 : vector<8x128xf32>
    %207 = arith.divf %205, %206 : vector<8x128xf32>
    %208 = vector.extract_strided_slice %189 {offsets = [0, 256], sizes = [8, 128], strides = [1, 1]} : vector<8x384xf32> to vector<8x128xf32>
    %209 = vector.extract_strided_slice %191 {offsets = [0, 256], sizes = [8, 128], strides = [1, 1]} : vector<8x384xf32> to vector<8x128xf32>
    %210 = vector.broadcast %4 : vector<1x128xf32> to vector<8x128xf32>
    %211 = arith.addf %209, %210 : vector<8x128xf32>
    %212 = arith.mulf %199, %211 : vector<8x128xf32>
    %213 = arith.addf %208, %212 : vector<8x128xf32>
    %214 = math.tanh %213 : vector<8x128xf32>
    %215 = arith.subf %181, %214 : vector<8x128xf32>
    %216 = arith.mulf %207, %215 : vector<8x128xf32>
    %217 = arith.addf %214, %216 : vector<8x128xf32>
    %218 = arith.index_cast %c5_i32 : i32 to index
    %c0_46 = arith.constant 0 : index
    %c0_47 = arith.constant 0 : index
    %219 = vector.load %arg5[%218, %c0_46, %c0_47] : memref<8x8x128xf32, #tpu.memory_space<vmem>>, vector<1x8x128xf32>
    %220 = vector.shape_cast %219 : vector<1x8x128xf32> to vector<8x128xf32>
    %221 = vector.shape_cast %217 : vector<8x128xf32> to vector<1x8x128xf32>
    tpu.vector_store %arg5[%218, %c0_46, %c0_47], %221 {strides = array<i32>} : memref<8x8x128xf32, #tpu.memory_space<vmem>>, vector<1x8x128xf32>,
    %c6_i32 = arith.constant 6 : i32
    %222 = arith.index_cast %c6_i32 : i32 to index
    %c0_48 = arith.constant 0 : index
    %c0_49 = arith.constant 0 : index
    %223 = vector.load %arg1[%222, %c0_48, %c0_49] : memref<8x8x384xbf16, #tpu.memory_space<vmem>>, vector<1x8x384xbf16>
    %224 = vector.shape_cast %223 : vector<1x8x384xbf16> to vector<8x384xbf16>
    %225 = arith.extf %224 : vector<8x384xbf16> to vector<8x384xf32>
    %226 = arith.truncf %217 : vector<8x128xf32> to vector<8x128xbf16>
    %cst_50 = arith.constant dense<0.000000e+00> : vector<8x384xf32>
    %227 = tpu.matmul %226, %3, %cst_50 {dimension_numbers = #tpu.dot_dimension_numbers<[1], [0], [0], [1], [0, 0, 1, 1], [], []>} : vector<8x128xbf16>, vector<128x384xbf16>, vector<8x384xf32> -> vector<8x384xf32>
    %228 = vector.extract_strided_slice %225 {offsets = [0, 0], sizes = [8, 128], strides = [1, 1]} : vector<8x384xf32> to vector<8x128xf32>
    %229 = vector.extract_strided_slice %227 {offsets = [0, 0], sizes = [8, 128], strides = [1, 1]} : vector<8x384xf32> to vector<8x128xf32>
    %230 = arith.addf %228, %229 : vector<8x128xf32>
    %231 = arith.negf %230 : vector<8x128xf32>
    %232 = math.exp %231 : vector<8x128xf32>
    %cst_51 = arith.constant 1.000000e+00 : f32
    %233 = vector.broadcast %cst_51 : f32 to vector<8x128xf32>
    %234 = arith.addf %233, %232 : vector<8x128xf32>
    %235 = arith.divf %233, %234 : vector<8x128xf32>
    %236 = vector.extract_strided_slice %225 {offsets = [0, 128], sizes = [8, 128], strides = [1, 1]} : vector<8x384xf32> to vector<8x128xf32>
    %237 = vector.extract_strided_slice %227 {offsets = [0, 128], sizes = [8, 128], strides = [1, 1]} : vector<8x384xf32> to vector<8x128xf32>
    %238 = arith.addf %236, %237 : vector<8x128xf32>
    %239 = arith.negf %238 : vector<8x128xf32>
    %240 = math.exp %239 : vector<8x128xf32>
    %cst_52 = arith.constant 1.000000e+00 : f32
    %241 = vector.broadcast %cst_52 : f32 to vector<8x128xf32>
    %242 = arith.addf %241, %240 : vector<8x128xf32>
    %243 = arith.divf %241, %242 : vector<8x128xf32>
    %244 = vector.extract_strided_slice %225 {offsets = [0, 256], sizes = [8, 128], strides = [1, 1]} : vector<8x384xf32> to vector<8x128xf32>
    %245 = vector.extract_strided_slice %227 {offsets = [0, 256], sizes = [8, 128], strides = [1, 1]} : vector<8x384xf32> to vector<8x128xf32>
    %246 = vector.broadcast %4 : vector<1x128xf32> to vector<8x128xf32>
    %247 = arith.addf %245, %246 : vector<8x128xf32>
    %248 = arith.mulf %235, %247 : vector<8x128xf32>
    %249 = arith.addf %244, %248 : vector<8x128xf32>
    %250 = math.tanh %249 : vector<8x128xf32>
    %251 = arith.subf %217, %250 : vector<8x128xf32>
    %252 = arith.mulf %243, %251 : vector<8x128xf32>
    %253 = arith.addf %250, %252 : vector<8x128xf32>
    %254 = arith.index_cast %c6_i32 : i32 to index
    %c0_53 = arith.constant 0 : index
    %c0_54 = arith.constant 0 : index
    %255 = vector.load %arg5[%254, %c0_53, %c0_54] : memref<8x8x128xf32, #tpu.memory_space<vmem>>, vector<1x8x128xf32>
    %256 = vector.shape_cast %255 : vector<1x8x128xf32> to vector<8x128xf32>
    %257 = vector.shape_cast %253 : vector<8x128xf32> to vector<1x8x128xf32>
    tpu.vector_store %arg5[%254, %c0_53, %c0_54], %257 {strides = array<i32>} : memref<8x8x128xf32, #tpu.memory_space<vmem>>, vector<1x8x128xf32>,
    %c7_i32 = arith.constant 7 : i32
    %258 = arith.index_cast %c7_i32 : i32 to index
    %c0_55 = arith.constant 0 : index
    %c0_56 = arith.constant 0 : index
    %259 = vector.load %arg1[%258, %c0_55, %c0_56] : memref<8x8x384xbf16, #tpu.memory_space<vmem>>, vector<1x8x384xbf16>
    %260 = vector.shape_cast %259 : vector<1x8x384xbf16> to vector<8x384xbf16>
    %261 = arith.extf %260 : vector<8x384xbf16> to vector<8x384xf32>
    %262 = arith.truncf %253 : vector<8x128xf32> to vector<8x128xbf16>
    %cst_57 = arith.constant dense<0.000000e+00> : vector<8x384xf32>
    %263 = tpu.matmul %262, %3, %cst_57 {dimension_numbers = #tpu.dot_dimension_numbers<[1], [0], [0], [1], [0, 0, 1, 1], [], []>} : vector<8x128xbf16>, vector<128x384xbf16>, vector<8x384xf32> -> vector<8x384xf32>
    %264 = vector.extract_strided_slice %261 {offsets = [0, 0], sizes = [8, 128], strides = [1, 1]} : vector<8x384xf32> to vector<8x128xf32>
    %265 = vector.extract_strided_slice %263 {offsets = [0, 0], sizes = [8, 128], strides = [1, 1]} : vector<8x384xf32> to vector<8x128xf32>
    %266 = arith.addf %264, %265 : vector<8x128xf32>
    %267 = arith.negf %266 : vector<8x128xf32>
    %268 = math.exp %267 : vector<8x128xf32>
    %cst_58 = arith.constant 1.000000e+00 : f32
    %269 = vector.broadcast %cst_58 : f32 to vector<8x128xf32>
    %270 = arith.addf %269, %268 : vector<8x128xf32>
    %271 = arith.divf %269, %270 : vector<8x128xf32>
    %272 = vector.extract_strided_slice %261 {offsets = [0, 128], sizes = [8, 128], strides = [1, 1]} : vector<8x384xf32> to vector<8x128xf32>
    %273 = vector.extract_strided_slice %263 {offsets = [0, 128], sizes = [8, 128], strides = [1, 1]} : vector<8x384xf32> to vector<8x128xf32>
    %274 = arith.addf %272, %273 : vector<8x128xf32>
    %275 = arith.negf %274 : vector<8x128xf32>
    %276 = math.exp %275 : vector<8x128xf32>
    %cst_59 = arith.constant 1.000000e+00 : f32
    %277 = vector.broadcast %cst_59 : f32 to vector<8x128xf32>
    %278 = arith.addf %277, %276 : vector<8x128xf32>
    %279 = arith.divf %277, %278 : vector<8x128xf32>
    %280 = vector.extract_strided_slice %261 {offsets = [0, 256], sizes = [8, 128], strides = [1, 1]} : vector<8x384xf32> to vector<8x128xf32>
    %281 = vector.extract_strided_slice %263 {offsets = [0, 256], sizes = [8, 128], strides = [1, 1]} : vector<8x384xf32> to vector<8x128xf32>
    %282 = vector.broadcast %4 : vector<1x128xf32> to vector<8x128xf32>
    %283 = arith.addf %281, %282 : vector<8x128xf32>
    %284 = arith.mulf %271, %283 : vector<8x128xf32>
    %285 = arith.addf %280, %284 : vector<8x128xf32>
    %286 = math.tanh %285 : vector<8x128xf32>
    %287 = arith.subf %253, %286 : vector<8x128xf32>
    %288 = arith.mulf %279, %287 : vector<8x128xf32>
    %289 = arith.addf %286, %288 : vector<8x128xf32>
    %290 = arith.index_cast %c7_i32 : i32 to index
    %c0_60 = arith.constant 0 : index
    %c0_61 = arith.constant 0 : index
    %291 = vector.load %arg5[%290, %c0_60, %c0_61] : memref<8x8x128xf32, #tpu.memory_space<vmem>>, vector<1x8x128xf32>
    %292 = vector.shape_cast %291 : vector<1x8x128xf32> to vector<8x128xf32>
    %293 = vector.shape_cast %289 : vector<8x128xf32> to vector<1x8x128xf32>
    tpu.vector_store %arg5[%290, %c0_60, %c0_61], %293 {strides = array<i32>} : memref<8x8x128xf32, #tpu.memory_space<vmem>>, vector<1x8x128xf32>,
    %c8_i32 = arith.constant 8 : i32
    %c0_62 = arith.constant 0 : index
    %c0_63 = arith.constant 0 : index
    %294 = vector.load %arg6[%c0_62, %c0_63] : memref<8x128xf32, #tpu.memory_space<vmem>>, vector<8x128xf32>
    tpu.vector_store %arg6[%c0_62, %c0_63], %289 {strides = array<i32>} : memref<8x128xf32, #tpu.memory_space<vmem>>, vector<8x128xf32>,
    return
  }
  func.func @transform_0(%arg0: i32) -> (i32, i32, i32) {
    %c0_i32 = arith.constant 0 : i32
    %c0_i32_0 = arith.constant 0 : i32
    %c0_i32_1 = arith.constant 0 : i32
    return %arg0, %c0_i32, %c0_i32_0 : i32, i32, i32
  }
  func.func @transform_1(%arg0: i32) -> (i32, i32) {
    %c0_i32 = arith.constant 0 : i32
    %c0_i32_0 = arith.constant 0 : i32
    %c0_i32_1 = arith.constant 0 : i32
    return %c0_i32, %c0_i32_0 : i32, i32
  }
  func.func @transform_2(%arg0: i32) -> (i32, i32) {
    %c0_i32 = arith.constant 0 : i32
    %c0_i32_0 = arith.constant 0 : i32
    %c0_i32_1 = arith.constant 0 : i32
    return %c0_i32, %c0_i32_0 : i32, i32
  }
  func.func @transform_3(%arg0: i32) -> (i32, i32) {
    %c0_i32 = arith.constant 0 : i32
    %c0_i32_0 = arith.constant 0 : i32
    %c0_i32_1 = arith.constant 0 : i32
    return %c0_i32, %c0_i32_0 : i32, i32
  }
  func.func @transform_4(%arg0: i32) -> (i32, i32, i32) {
    %c0_i32 = arith.constant 0 : i32
    %c0_i32_0 = arith.constant 0 : i32
    %c0_i32_1 = arith.constant 0 : i32
    return %arg0, %c0_i32, %c0_i32_0 : i32, i32, i32
  }
}

</mosaic_0001>

<llo_original>
// kernel: tpu_custom_call.1
$region0: #{tpu_custom_call.1}
  #allocation0 [shape = 'u32[]', space=smem, size = 0x4, offset = 0x4, fixed_abs, tag = 'smem constant byte address 0x4 - core index']
  #allocation1 [shape = 'u32[144,128]{1,0:T(1,128)}', space=vmem, size = 0x12000, scoped, tag = 'internal scratch']
  #allocation2 [shape = 'f32[8,128]{1,0:T(8,128)}', space=vmem, size = 0x1000, scoped, tag = 'scratch operand']
  %s0 = inlined_call_operand.hbm [shape: bf16[8,8,384], index: 0, kind: input, shape index: {}]
  %s1 = inlined_call_operand.hbm [shape: f32[8,128], index: 1, kind: input, shape index: {}]
  %s2 = inlined_call_operand.hbm [shape: bf16[128,384], index: 2, kind: input, shape index: {}]
  %s3 = inlined_call_operand.vmem [shape: f32[1,128], index: 3, kind: input, shape index: {}]
  %s4 = inlined_call_operand.hbm [shape: f32[8,8,128], index: 4, kind: output, shape index: {}]
  %s5 = sld [smem:[#allocation0]]
  $region42: #{tpu_custom_call.1} parent=0
    _
  %s7 = ssub.s32 1, %s5
  %s8 = scalar_select 0, %s7, %s5
  $region1: #{tpu_custom_call.1} parent=0
    #allocation3 [shape = 'u8[49152]{0}', space=vmem, size = 0xc000, scoped, tag = 'input window, operand 0, single buffered']
    #allocation4 [shape = 's32[1]{0}', space=sflag, size = 0x4, scoped, tag = 'scoped memory for tpu_custom_call.1']
    #allocation5 [shape = 's32[1]{0}', space=sflag, size = 0x4, scoped, tag = 'scoped memory for tpu_custom_call.1']
    #allocation6 [shape = 'u8[4096]{0}', space=vmem, size = 0x1000, scoped, tag = 'input window, operand 1, single buffered']
    #allocation7 [shape = 's32[1]{0}', space=sflag, size = 0x4, scoped, tag = 'scoped memory for tpu_custom_call.1']
    #allocation8 [shape = 'u8[98304]{0}', space=vmem, size = 0x18000, scoped, tag = 'input window, operand 2, single buffered']
    #allocation9 [shape = 'u8[32768]{0}', space=vmem, size = 0x8000, scoped, tag = 'output window, operand 0, single buffered']
    %9 = vsyncpa [#allocation4], 0
    %10 = vsyncpa [#allocation7], 0
    %11 = vsyncpa [#allocation5], 0
    // Predicated region
    $region2: #{tpu_custom_call.1} parent=1 // pred_check
      _
    $region3: #{tpu_custom_call.1} parent=1 // pred_check_branch
      %13 = sbr.rel (0) target = $region5
    $region4: #{tpu_custom_call.1} parent=1 // pred_region
      %s15 = ssub.s32 1536, 1536
      %16 = vsyncadd [#allocation4], %s15
      %s17 = sshll.u32 [#allocation3], 4
      %s18 = int_to_ptr.vmem [resolvable:$true] %s17
      %23 = dma.hbm_to_vmem [thread:$0]  %s0, 1536, %s18, [#allocation4], 192, 192, 12
    $region5: #{tpu_custom_call.1} parent=1 // pred_fallthru
      _
    // Predicated region
    $region6: #{tpu_custom_call.1} parent=1 // pred_check
      _
    $region7: #{tpu_custom_call.1} parent=1 // pred_check_branch
      %25 = sbr.rel (0) target = $region9
    $region8: #{tpu_custom_call.1} parent=1 // pred_region
      %s27 = ssub.s32 128, 128
      %28 = vsyncadd [#allocation7], %s27
      %s30 = sshll.u32 [#allocation6], 4
      %s31 = int_to_ptr.vmem [resolvable:$true] %s30
      %33 = dma.hbm_to_vmem [thread:$0]  %s1, 128, %s31, [#allocation7]
    $region9: #{tpu_custom_call.1} parent=1 // pred_fallthru
      _
    // Predicated region
    $region10: #{tpu_custom_call.1} parent=1 // pred_check
      _
    $region11: #{tpu_custom_call.1} parent=1 // pred_check_branch
      %35 = sbr.rel (0) target = $region13
    $region12: #{tpu_custom_call.1} parent=1 // pred_region
      %s37 = ssub.s32 3072, 3072
      %38 = vsyncadd [#allocation7], %s37
      %s39 = sshll.u32 [#allocation8], 4
      %s40 = int_to_ptr.vmem [resolvable:$true] %s39
      %45 = dma.hbm_to_vmem [thread:$0]  %s2, 3072, %s40, [#allocation7], 192, 192, 12
    $region13: #{tpu_custom_call.1} parent=1 // pred_fallthru
      _
    // Predicated region
    $region14: #{tpu_custom_call.1} parent=1 // pred_check
      _
    $region15: #{tpu_custom_call.1} parent=1 // pred_check_branch
      %47 = sbr.rel (0) target = $region17
    $region16: #{tpu_custom_call.1} parent=1 // pred_region
      _
    $region17: #{tpu_custom_call.1} parent=1 // pred_fallthru
      _
    // Predicated region
    $region18: #{tpu_custom_call.1} parent=1 // pred_check
      _
    $region19: #{tpu_custom_call.1} parent=1 // pred_check_branch
      %49 = sbr.rel (0) target = $region21
    $region20: #{tpu_custom_call.1} parent=1 // pred_region
      %50 = dma.done [#allocation4], 1536
    $region21: #{tpu_custom_call.1} parent=1 // pred_fallthru
      _
    // Predicated region
    $region22: #{tpu_custom_call.1} parent=1 // pred_check
      _
    $region23: #{tpu_custom_call.1} parent=1 // pred_check_branch
      %52 = sbr.rel (0) target = $region25
    $region24: #{tpu_custom_call.1} parent=1 // pred_region
      %53 = dma.done [#allocation7], 128
    $region25: #{tpu_custom_call.1} parent=1 // pred_fallthru
      _
    // Predicated region
    $region26: #{tpu_custom_call.1} parent=1 // pred_check
      _
    $region27: #{tpu_custom_call.1} parent=1 // pred_check_branch
      %55 = sbr.rel (0) target = $region29
    $region28: #{tpu_custom_call.1} parent=1 // pred_region
      %56 = dma.done [#allocation7], 3072
    $region29: #{tpu_custom_call.1} parent=1 // pred_fallthru
      _
    %p58 = scmp.eq.s32.totalorder 0, 0
    // Predicated region
    $region30: #{tpu_custom_call.1} parent=1 // pred_check
      %p59 = pneg %p58
    $region31: #{tpu_custom_call.1} parent=1 // pred_check_branch
      %61 = sbr.rel (%p59) target = $region33
    $region32: #{tpu_custom_call.1} parent=1 // pred_region
      %v62 = vld [vmem:[#allocation6] sm:$0xff]
      %63 = vst [vmem:[#allocation2] sm:$0xff] %v62
    $region33: #{tpu_custom_call.1} parent=1 // pred_fallthru
      _
    %v64 = vld [vmem:[#allocation8] sm:$0xff]
    %v65 = vld [vmem:[#allocation8 + $0x8] sm:$0xf]
    %v66 = vld [vmem:[#allocation8 + $0xc] sm:$0xff]
    %v67 = vld [vmem:[#allocation8 + $0x14] sm:$0xf]
    %v68 = vld [vmem:[#allocation8 + $0x18] sm:$0xff]
    %v69 = vld [vmem:[#allocation8 + $0x20] sm:$0xf]
    %v70 = vld [vmem:[#allocation8 + $0x24] sm:$0xff]
    %v71 = vld [vmem:[#allocation8 + $0x2c] sm:$0xf]
    %v72 = vld [vmem:[#allocation8 + $0x30] sm:$0xff]
    %v73 = vld [vmem:[#allocation8 + $0x38] sm:$0xf]
    %v74 = vld [vmem:[#allocation8 + $0x3c] sm:$0xff]
    %v75 = vld [vmem:[#allocation8 + $0x44] sm:$0xf]
    %v76 = vld [vmem:[#allocation8 + $0x48] sm:$0xff]
    %v77 = vld [vmem:[#allocation8 + $0x50] sm:$0xf]
    %v78 = vld [vmem:[#allocation8 + $0x54] sm:$0xff]
    %v79 = vld [vmem:[#allocation8 + $0x5c] sm:$0xf]
    %v80 = vld [vmem:[#allocation8 + $0x60] sm:$0xff]
    %v81 = vld [vmem:[#allocation8 + $0x68] sm:$0xf]
    %v82 = vld [vmem:[#allocation8 + $0x6c] sm:$0xff]
    %v83 = vld [vmem:[#allocation8 + $0x74] sm:$0xf]
    %v84 = vld [vmem:[#allocation8 + $0x78] sm:$0xff]
    %v85 = vld [vmem:[#allocation8 + $0x80] sm:$0xf]
    %v86 = vld [vmem:[#allocation8 + $0x84] sm:$0xff]
    %v87 = vld [vmem:[#allocation8 + $0x8c] sm:$0xf]
    %v88 = vld [vmem:[#allocation8 + $0x90] sm:$0xff]
    %v89 = vld [vmem:[#allocation8 + $0x98] sm:$0xf]
    %v90 = vld [vmem:[#allocation8 + $0x9c] sm:$0xff]
    %v91 = vld [vmem:[#allocation8 + $0xa4] sm:$0xf]
    %v92 = vld [vmem:[#allocation8 + $0xa8] sm:$0xff]
    %v93 = vld [vmem:[#allocation8 + $0xb0] sm:$0xf]
    %v94 = vld [vmem:[#allocation8 + $0xb4] sm:$0xff]
    %v95 = vld [vmem:[#allocation8 + $0xbc] sm:$0xf]
    %v96 = vld [vmem:[%s3] sm:$0x1]
    %v97 = vld [vmem:[#allocation2] sm:$0xff]
    %v98 = vld [vmem:[#allocation3] sm:$0xff]
    %v99 = vld [vmem:[#allocation3 + $0x8] sm:$0xf]
    %v100 = vunpack.c.l.bf16 %v98
    %v101 = vunpack.c.h.bf16 %v98
    %v102 = vunpack.c.l.bf16 %v99
    %v103 = vpack.c.bf16 %v97, %v97
    %v136 = vunpack.c.l.b16 %v64
    %v137 = vunpack.c.h.b16 %v64
    %v138 = vunpack.c.l.b16 %v65
    %v139 = vunpack.c.l.b16 %v66
    %v140 = vunpack.c.h.b16 %v66
    %v141 = vunpack.c.l.b16 %v67
    %v142 = vunpack.c.l.b16 %v68
    %v143 = vunpack.c.h.b16 %v68
    %v144 = vunpack.c.l.b16 %v69
    %v145 = vunpack.c.l.b16 %v70
    %v146 = vunpack.c.h.b16 %v70
    %v147 = vunpack.c.l.b16 %v71
    %v148 = vunpack.c.l.b16 %v72
    %v149 = vunpack.c.h.b16 %v72
    %v150 = vunpack.c.l.b16 %v73
    %v151 = vunpack.c.l.b16 %v74
    %v152 = vunpack.c.h.b16 %v74
    %v153 = vunpack.c.l.b16 %v75
    %v154 = vunpack.c.l.b16 %v76
    %v155 = vunpack.c.h.b16 %v76
    %v156 = vunpack.c.l.b16 %v77
    %v157 = vunpack.c.l.b16 %v78
    %v158 = vunpack.c.h.b16 %v78
    %v159 = vunpack.c.l.b16 %v79
    %v160 = vunpack.c.l.b16 %v80
    %v161 = vunpack.c.h.b16 %v80
    %v162 = vunpack.c.l.b16 %v81
    %v163 = vunpack.c.l.b16 %v82
    %v164 = vunpack.c.h.b16 %v82
    %v165 = vunpack.c.l.b16 %v83
    %v166 = vunpack.c.l.b16 %v84
    %v167 = vunpack.c.h.b16 %v84
    %v168 = vunpack.c.l.b16 %v85
    %v169 = vunpack.c.l.b16 %v86
    %v170 = vunpack.c.h.b16 %v86
    %v171 = vunpack.c.l.b16 %v87
    %v172 = vunpack.c.l.b16 %v88
    %v173 = vunpack.c.h.b16 %v88
    %v174 = vunpack.c.l.b16 %v89
    %v175 = vunpack.c.l.b16 %v90
    %v176 = vunpack.c.h.b16 %v90
    %v177 = vunpack.c.l.b16 %v91
    %v178 = vunpack.c.l.b16 %v92
    %v179 = vunpack.c.h.b16 %v92
    %v180 = vunpack.c.l.b16 %v93
    %v181 = vunpack.c.l.b16 %v94
    %v182 = vunpack.c.h.b16 %v94
    %v183 = vunpack.c.l.b16 %v95
    %v184 = vpack.c.b16 %v139, %v136
    %v185 = vpack.c.b16 %v140, %v137
    %v186 = vpack.c.b16 %v141, %v138
    %v187 = vpack.c.b16 %v145, %v142
    %v188 = vpack.c.b16 %v146, %v143
    %v189 = vpack.c.b16 %v147, %v144
    %v190 = vpack.c.b16 %v151, %v148
    %v191 = vpack.c.b16 %v152, %v149
    %v192 = vpack.c.b16 %v153, %v150
    %v193 = vpack.c.b16 %v157, %v154
    %v194 = vpack.c.b16 %v158, %v155
    %v195 = vpack.c.b16 %v159, %v156
    %v196 = vpack.c.b16 %v163, %v160
    %v197 = vpack.c.b16 %v164, %v161
    %v198 = vpack.c.b16 %v165, %v162
    %v199 = vpack.c.b16 %v169, %v166
    %v200 = vpack.c.b16 %v170, %v167
    %v201 = vpack.c.b16 %v171, %v168
    %v202 = vpack.c.b16 %v175, %v172
    %v203 = vpack.c.b16 %v176, %v173
    %v204 = vpack.c.b16 %v177, %v174
    %v205 = vpack.c.b16 %v181, %v178
    %v206 = vpack.c.b16 %v182, %v179
    %v207 = vpack.c.b16 %v183, %v180
    %232 = vmatprep.subr.bf16.mxu0 %v185
    %233 = vmatpush1.bf16.msra.mxu0 %v184
    %234 = vmatprep.subr.bf16.mxu0 %v188
    %235 = vmatpush1.bf16.msra.mxu0 %v187
    %236 = vmatprep.subr.bf16.mxu0 %v191
    %237 = vmatpush1.bf16.msra.mxu0 %v190
    %238 = vmatprep.subr.bf16.mxu0 %v194
    %239 = vmatpush1.bf16.msra.mxu0 %v193
    %240 = vmatprep.subr.bf16.mxu0 %v197
    %241 = vmatpush1.bf16.msra.mxu0 %v196
    %242 = vmatprep.subr.bf16.mxu0 %v200
    %243 = vmatpush1.bf16.msra.mxu0 %v199
    %244 = vmatprep.subr.bf16.mxu0 %v203
    %245 = vmatpush1.bf16.msra.mxu0 %v202
    %246 = vmatprep.subr.bf16.mxu0 %v206
    %247 = vmatpush1.bf16.msra.mxu0 %v205
    %248 = vmatprep.subr.bf16.mxu0 0
    %249 = vmatpush1.bf16.msra.mxu0 0
    %250 = vmatprep.subr.bf16.mxu0 0
    %251 = vmatpush1.bf16.msra.mxu0 0
    %252 = vmatprep.subr.bf16.mxu0 0
    %253 = vmatpush1.bf16.msra.mxu0 0
    %254 = vmatprep.subr.bf16.mxu0 0
    %255 = vmatpush1.bf16.msra.mxu0 0
    %256 = vmatprep.subr.bf16.mxu0 0
    %257 = vmatpush1.bf16.msra.mxu0 0
    %258 = vmatprep.subr.bf16.mxu0 0
    %259 = vmatpush1.bf16.msra.mxu0 0
    %260 = vmatprep.subr.bf16.mxu0 0
    %261 = vmatpush1.bf16.msra.mxu0 0
    %262 = vmatprep.subr.bf16.mxu0 0
    %263 = vmatpush1.bf16.msra.mxu0 0
    %264 = vmatprep.mubr.bf16.mxu0 0
    %265 = vmatmul.mubr.bf16.gmra.mrb[0].mxu0 %v103
    %v266 = vpop.f32.mrb[0].mxu0
    %v267 = vadd.f32 0.0, %v266
    %v268 = vpop.f32.mrb[0].mxu0
    %v269 = vadd.f32 0.0, %v268
    %v270 = vpop.f32.mrb[0].mxu0
    %v271 = vpop.f32.mrb[0].mxu0
    %272 = vdwg.mxu0
    %273 = vmatprep.subr.bf16.mxu0 0
    %274 = vmatpush1.bf16.msra.mxu0 %v186
    %275 = vmatprep.subr.bf16.mxu0 0
    %276 = vmatpush1.bf16.msra.mxu0 %v189
    %277 = vmatprep.subr.bf16.mxu0 0
    %278 = vmatpush1.bf16.msra.mxu0 %v192
    %279 = vmatprep.subr.bf16.mxu0 0
    %280 = vmatpush1.bf16.msra.mxu0 %v195
    %281 = vmatprep.subr.bf16.mxu0 0
    %282 = vmatpush1.bf16.msra.mxu0 %v198
    %283 = vmatprep.subr.bf16.mxu0 0
    %284 = vmatpush1.bf16.msra.mxu0 %v201
    %285 = vmatprep.subr.bf16.mxu0 0
    %286 = vmatpush1.bf16.msra.mxu0 %v204
    %287 = vmatprep.subr.bf16.mxu0 0
    %288 = vmatpush1.bf16.msra.mxu0 %v207
    %289 = vmatprep.subr.bf16.mxu0 0
    %290 = vmatpush1.bf16.msra.mxu0 0
    %291 = vmatprep.subr.bf16.mxu0 0
    %292 = vmatpush1.bf16.msra.mxu0 0
    %293 = vmatprep.subr.bf16.mxu0 0
    %294 = vmatpush1.bf16.msra.mxu0 0
    %295 = vmatprep.subr.bf16.mxu0 0
    %296 = vmatpush1.bf16.msra.mxu0 0
    %297 = vmatprep.subr.bf16.mxu0 0
    %298 = vmatpush1.bf16.msra.mxu0 0
    %299 = vmatprep.subr.bf16.mxu0 0
    %300 = vmatpush1.bf16.msra.mxu0 0
    %301 = vmatprep.subr.bf16.mxu0 0
    %302 = vmatpush1.bf16.msra.mxu0 0
    %303 = vmatprep.subr.bf16.mxu0 0
    %304 = vmatpush1.bf16.msra.mxu0 0
    %305 = vmatprep.mubr.bf16.mxu0 0
    %306 = vmatmul.mubr.bf16.gmra.mrb[0].mxu0 %v103
    %v307 = vpop.f32.mrb[0].mxu0
    %v308 = vadd.f32 0.0, %v307
    %v309 = vpop.f32.mrb[0].mxu0
    %v310 = vpop.f32.mrb[0].mxu0
    %v311 = vpop.f32.mrb[0].mxu0
    %312 = vdwg.mxu0
    %v313 = vadd.f32 %v100, %v267
    %v314 = vxor.u32 %v313, 2147483648
    %v315 = vmul.f32 %v314, 1.442695
    %v316 = vpow.pop %v315
    %v317 = vadd.f32 %v316, 1.0
    %v318 = vrcp.pop %v317
    %v319 = vmul.f32 1.0, %v318
    %v320 = vadd.f32 %v101, %v269
    %v321 = vxor.u32 %v320, 2147483648
    %v322 = vmul.f32 %v321, 1.442695
    %v323 = vpow.pop %v322
    %v324 = vadd.f32 %v323, 1.0
    %v325 = vrcp.pop %v324
    %v326 = vmul.f32 1.0, %v325
    %v328 = vlaneseq
    %v329 = vshrl.u32 %v328, 7
    %v330 = vsub.s32 0, %v329
    %v331 = vrot.slane %v96, %v330
    %v333 = vadd.f32 %v308, %v331
    %v334 = vmul.f32 %v319, %v333
    %v335 = vadd.f32 %v102, %v334
    %v336 = vtanh.pop %v335
    %v337 = vsub.f32 %v97, %v336
    %v338 = vmul.f32 %v326, %v337
    %v339 = vadd.f32 %v336, %v338
    %340 = vst [vmem:[#allocation9] sm:$0xff] %v339
    %s341 = scalar_lea.vmem [#allocation3], 12
    %v342 = vld [vmem:[%s341] sm:$0xff]
    %v343 = vld [vmem:[%s341 + $0x8] sm:$0xf]
    %v344 = vunpack.c.l.bf16 %v342
    %v345 = vunpack.c.h.bf16 %v342
    %v346 = vunpack.c.l.bf16 %v343
    %v347 = vpack.c.bf16 %v339, %v339
    %348 = vmatprep.subr.bf16.mxu0 %v185
    %349 = vmatpush1.bf16.msra.mxu0 %v184
    %350 = vmatprep.subr.bf16.mxu0 %v188
    %351 = vmatpush1.bf16.msra.mxu0 %v187
    %352 = vmatprep.subr.bf16.mxu0 %v191
    %353 = vmatpush1.bf16.msra.mxu0 %v190
    %354 = vmatprep.subr.bf16.mxu0 %v194
    %355 = vmatpush1.bf16.msra.mxu0 %v193
    %356 = vmatprep.subr.bf16.mxu0 %v197
    %357 = vmatpush1.bf16.msra.mxu0 %v196
    %358 = vmatprep.subr.bf16.mxu0 %v200
    %359 = vmatpush1.bf16.msra.mxu0 %v199
    %360 = vmatprep.subr.bf16.mxu0 %v203
    %361 = vmatpush1.bf16.msra.mxu0 %v202
    %362 = vmatprep.subr.bf16.mxu0 %v206
    %363 = vmatpush1.bf16.msra.mxu0 %v205
    %364 = vmatprep.subr.bf16.mxu0 0
    %365 = vmatpush1.bf16.msra.mxu0 0
    %366 = vmatprep.subr.bf16.mxu0 0
    %367 = vmatpush1.bf16.msra.mxu0 0
    %368 = vmatprep.subr.bf16.mxu0 0
    %369 = vmatpush1.bf16.msra.mxu0 0
    %370 = vmatprep.subr.bf16.mxu0 0
    %371 = vmatpush1.bf16.msra.mxu0 0
    %372 = vmatprep.subr.bf16.mxu0 0
    %373 = vmatpush1.bf16.msra.mxu0 0
    %374 = vmatprep.subr.bf16.mxu0 0
    %375 = vmatpush1.bf16.msra.mxu0 0
    %376 = vmatprep.subr.bf16.mxu0 0
    %377 = vmatpush1.bf16.msra.mxu0 0
    %378 = vmatprep.subr.bf16.mxu0 0
    %379 = vmatpush1.bf16.msra.mxu0 0
    %380 = vmatprep.mubr.bf16.mxu0 0
    %381 = vmatmul.mubr.bf16.gmra.mrb[0].mxu0 %v347
    %v382 = vpop.f32.mrb[0].mxu0
    %v383 = vadd.f32 0.0, %v382
    %v384 = vpop.f32.mrb[0].mxu0
    %v385 = vadd.f32 0.0, %v384
    %v386 = vpop.f32.mrb[0].mxu0
    %v387 = vpop.f32.mrb[0].mxu0
    %388 = vdwg.mxu0
    %389 = vmatprep.subr.bf16.mxu0 0
    %390 = vmatpush1.bf16.msra.mxu0 %v186
    %391 = vmatprep.subr.bf16.mxu0 0
    %392 = vmatpush1.bf16.msra.mxu0 %v189
    %393 = vmatprep.subr.bf16.mxu0 0
    %394 = vmatpush1.bf16.msra.mxu0 %v192
    %395 = vmatprep.subr.bf16.mxu0 0
    %396 = vmatpush1.bf16.msra.mxu0 %v195
    %397 = vmatprep.subr.bf16.mxu0 0
    %398 = vmatpush1.bf16.msra.mxu0 %v198
    %399 = vmatprep.subr.bf16.mxu0 0
    %400 = vmatpush1.bf16.msra.mxu0 %v201
    %401 = vmatprep.subr.bf16.mxu0 0
    %402 = vmatpush1.bf16.msra.mxu0 %v204
    %403 = vmatprep.subr.bf16.mxu0 0
    %404 = vmatpush1.bf16.msra.mxu0 %v207
    %405 = vmatprep.subr.bf16.mxu0 0
    %406 = vmatpush1.bf16.msra.mxu0 0
    %407 = vmatprep.subr.bf16.mxu0 0
    %408 = vmatpush1.bf16.msra.mxu0 0
    %409 = vmatprep.subr.bf16.mxu0 0
    %410 = vmatpush1.bf16.msra.mxu0 0
    %411 = vmatprep.subr.bf16.mxu0 0
    %412 = vmatpush1.bf16.msra.mxu0 0
    %413 = vmatprep.subr.bf16.mxu0 0
    %414 = vmatpush1.bf16.msra.mxu0 0
    %415 = vmatprep.subr.bf16.mxu0 0
    %416 = vmatpush1.bf16.msra.mxu0 0
    %417 = vmatprep.subr.bf16.mxu0 0
    %418 = vmatpush1.bf16.msra.mxu0 0
    %419 = vmatprep.subr.bf16.mxu0 0
    %420 = vmatpush1.bf16.msra.mxu0 0
    %421 = vmatprep.mubr.bf16.mxu0 0
    %422 = vmatmul.mubr.bf16.gmra.mrb[0].mxu0 %v347
    %v423 = vpop.f32.mrb[0].mxu0
    %v424 = vadd.f32 0.0, %v423
    %v425 = vpop.f32.mrb[0].mxu0
    %v426 = vpop.f32.mrb[0].mxu0
    %v427 = vpop.f32.mrb[0].mxu0
    %428 = vdwg.mxu0
    %v429 = vadd.f32 %v344, %v383
    %v430 = vxor.u32 %v429, 2147483648
    %v431 = vmul.f32 %v430, 1.442695
    %v432 = vpow.pop %v431
    %v433 = vadd.f32 %v432, 1.0
    %v434 = vrcp.pop %v433
    %v435 = vmul.f32 1.0, %v434
    %v436 = vadd.f32 %v345, %v385
    %v437 = vxor.u32 %v436, 2147483648
    %v438 = vmul.f32 %v437, 1.442695
    %v439 = vpow.pop %v438
    %v440 = vadd.f32 %v439, 1.0
    %v441 = vrcp.pop %v440
    %v442 = vmul.f32 1.0, %v441
    %v443 = vadd.f32 %v424, %v331
    %v444 = vmul.f32 %v435, %v443
    %v445 = vadd.f32 %v346, %v444
    %v446 = vtanh.pop %v445
    %v447 = vsub.f32 %v339, %v446
    %v448 = vmul.f32 %v442, %v447
    %v449 = vadd.f32 %v446, %v448
    %s450 = scalar_lea.vmem [#allocation9], 8
    %451 = vst [vmem:[%s450] sm:$0xff] %v449
    %s452 = scalar_lea.vmem [#allocation3], 24
    %v453 = vld [vmem:[%s452] sm:$0xff]
    %v454 = vld [vmem:[%s452 + $0x8] sm:$0xf]
    %v455 = vunpack.c.l.bf16 %v453
    %v456 = vunpack.c.h.bf16 %v453
    %v457 = vunpack.c.l.bf16 %v454
    %v458 = vpack.c.bf16 %v449, %v449
    %459 = vmatprep.subr.bf16.mxu0 %v185
    %460 = vmatpush1.bf16.msra.mxu0 %v184
    %461 = vmatprep.subr.bf16.mxu0 %v188
    %462 = vmatpush1.bf16.msra.mxu0 %v187
    %463 = vmatprep.subr.bf16.mxu0 %v191
    %464 = vmatpush1.bf16.msra.mxu0 %v190
    %465 = vmatprep.subr.bf16.mxu0 %v194
    %466 = vmatpush1.bf16.msra.mxu0 %v193
    %467 = vmatprep.subr.bf16.mxu0 %v197
    %468 = vmatpush1.bf16.msra.mxu0 %v196
    %469 = vmatprep.subr.bf16.mxu0 %v200
    %470 = vmatpush1.bf16.msra.mxu0 %v199
    %471 = vmatprep.subr.bf16.mxu0 %v203
    %472 = vmatpush1.bf16.msra.mxu0 %v202
    %473 = vmatprep.subr.bf16.mxu0 %v206
    %474 = vmatpush1.bf16.msra.mxu0 %v205
    %475 = vmatprep.subr.bf16.mxu0 0
    %476 = vmatpush1.bf16.msra.mxu0 0
    %477 = vmatprep.subr.bf16.mxu0 0
    %478 = vmatpush1.bf16.msra.mxu0 0
    %479 = vmatprep.subr.bf16.mxu0 0
    %480 = vmatpush1.bf16.msra.mxu0 0
    %481 = vmatprep.subr.bf16.mxu0 0
    %482 = vmatpush1.bf16.msra.mxu0 0
    %483 = vmatprep.subr.bf16.mxu0 0
    %484 = vmatpush1.bf16.msra.mxu0 0
    %485 = vmatprep.subr.bf16.mxu0 0
    %486 = vmatpush1.bf16.msra.mxu0 0
    %487 = vmatprep.subr.bf16.mxu0 0
    %488 = vmatpush1.bf16.msra.mxu0 0
    %489 = vmatprep.subr.bf16.mxu0 0
    %490 = vmatpush1.bf16.msra.mxu0 0
    %491 = vmatprep.mubr.bf16.mxu0 0
    %492 = vmatmul.mubr.bf16.gmra.mrb[0].mxu0 %v458
    %v493 = vpop.f32.mrb[0].mxu0
    %v494 = vadd.f32 0.0, %v493
    %v495 = vpop.f32.mrb[0].mxu0
    %v496 = vadd.f32 0.0, %v495
    %v497 = vpop.f32.mrb[0].mxu0
    %v498 = vpop.f32.mrb[0].mxu0
    %499 = vdwg.mxu0
    %500 = vmatprep.subr.bf16.mxu0 0
    %501 = vmatpush1.bf16.msra.mxu0 %v186
    %502 = vmatprep.subr.bf16.mxu0 0
    %503 = vmatpush1.bf16.msra.mxu0 %v189
    %504 = vmatprep.subr.bf16.mxu0 0
    %505 = vmatpush1.bf16.msra.mxu0 %v192
    %506 = vmatprep.subr.bf16.mxu0 0
    %507 = vmatpush1.bf16.msra.mxu0 %v195
    %508 = vmatprep.subr.bf16.mxu0 0
    %509 = vmatpush1.bf16.msra.mxu0 %v198
    %510 = vmatprep.subr.bf16.mxu0 0
    %511 = vmatpush1.bf16.msra.mxu0 %v201
    %512 = vmatprep.subr.bf16.mxu0 0
    %513 = vmatpush1.bf16.msra.mxu0 %v204
    %514 = vmatprep.subr.bf16.mxu0 0
    %515 = vmatpush1.bf16.msra.mxu0 %v207
    %516 = vmatprep.subr.bf16.mxu0 0
    %517 = vmatpush1.bf16.msra.mxu0 0
    %518 = vmatprep.subr.bf16.mxu0 0
    %519 = vmatpush1.bf16.msra.mxu0 0
    %520 = vmatprep.subr.bf16.mxu0 0
    %521 = vmatpush1.bf16.msra.mxu0 0
    %522 = vmatprep.subr.bf16.mxu0 0
    %523 = vmatpush1.bf16.msra.mxu0 0
    %524 = vmatprep.subr.bf16.mxu0 0
    %525 = vmatpush1.bf16.msra.mxu0 0
    %526 = vmatprep.subr.bf16.mxu0 0
    %527 = vmatpush1.bf16.msra.mxu0 0
    %528 = vmatprep.subr.bf16.mxu0 0
    %529 = vmatpush1.bf16.msra.mxu0 0
    %530 = vmatprep.subr.bf16.mxu0 0
    %531 = vmatpush1.bf16.msra.mxu0 0
    %532 = vmatprep.mubr.bf16.mxu0 0
    %533 = vmatmul.mubr.bf16.gmra.mrb[0].mxu0 %v458
    %v534 = vpop.f32.mrb[0].mxu0
    %v535 = vadd.f32 0.0, %v534
    %v536 = vpop.f32.mrb[0].mxu0
    %v537 = vpop.f32.mrb[0].mxu0
    %v538 = vpop.f32.mrb[0].mxu0
    %539 = vdwg.mxu0
    %v540 = vadd.f32 %v455, %v494
    %v541 = vxor.u32 %v540, 2147483648
    %v542 = vmul.f32 %v541, 1.442695
    %v543 = vpow.pop %v542
    %v544 = vadd.f32 %v543, 1.0
    %v545 = vrcp.pop %v544
    %v546 = vmul.f32 1.0, %v545
    %v547 = vadd.f32 %v456, %v496
    %v548 = vxor.u32 %v547, 2147483648
    %v549 = vmul.f32 %v548, 1.442695
    %v550 = vpow.pop %v549
    %v551 = vadd.f32 %v550, 1.0
    %v552 = vrcp.pop %v551
    %v553 = vmul.f32 1.0, %v552
    %v554 = vadd.f32 %v535, %v331
    %v555 = vmul.f32 %v546, %v554
    %v556 = vadd.f32 %v457, %v555
    %v557 = vtanh.pop %v556
    %v558 = vsub.f32 %v449, %v557
    %v559 = vmul.f32 %v553, %v558
    %v560 = vadd.f32 %v557, %v559
    %s561 = scalar_lea.vmem [#allocation9], 16
    %562 = vst [vmem:[%s561] sm:$0xff] %v560
    %s563 = scalar_lea.vmem [#allocation3], 36
    %v564 = vld [vmem:[%s563] sm:$0xff]
    %v565 = vld [vmem:[%s563 + $0x8] sm:$0xf]
    %v566 = vunpack.c.l.bf16 %v564
    %v567 = vunpack.c.h.bf16 %v564
    %v568 = vunpack.c.l.bf16 %v565
    %v569 = vpack.c.bf16 %v560, %v560
    %570 = vmatprep.subr.bf16.mxu0 %v185
    %571 = vmatpush1.bf16.msra.mxu0 %v184
    %572 = vmatprep.subr.bf16.mxu0 %v188
    %573 = vmatpush1.bf16.msra.mxu0 %v187
    %574 = vmatprep.subr.bf16.mxu0 %v191
    %575 = vmatpush1.bf16.msra.mxu0 %v190
    %576 = vmatprep.subr.bf16.mxu0 %v194
    %577 = vmatpush1.bf16.msra.mxu0 %v193
    %578 = vmatprep.subr.bf16.mxu0 %v197
    %579 = vmatpush1.bf16.msra.mxu0 %v196
    %580 = vmatprep.subr.bf16.mxu0 %v200
    %581 = vmatpush1.bf16.msra.mxu0 %v199
    %582 = vmatprep.subr.bf16.mxu0 %v203
    %583 = vmatpush1.bf16.msra.mxu0 %v202
    %584 = vmatprep.subr.bf16.mxu0 %v206
    %585 = vmatpush1.bf16.msra.mxu0 %v205
    %586 = vmatprep.subr.bf16.mxu0 0
    %587 = vmatpush1.bf16.msra.mxu0 0
    %588 = vmatprep.subr.bf16.mxu0 0
    %589 = vmatpush1.bf16.msra.mxu0 0
    %590 = vmatprep.subr.bf16.mxu0 0
    %591 = vmatpush1.bf16.msra.mxu0 0
    %592 = vmatprep.subr.bf16.mxu0 0
    %593 = vmatpush1.bf16.msra.mxu0 0
    %594 = vmatprep.subr.bf16.mxu0 0
    %595 = vmatpush1.bf16.msra.mxu0 0
    %596 = vmatprep.subr.bf16.mxu0 0
    %597 = vmatpush1.bf16.msra.mxu0 0
    %598 = vmatprep.subr.bf16.mxu0 0
    %599 = vmatpush1.bf16.msra.mxu0 0
    %600 = vmatprep.subr.bf16.mxu0 0
    %601 = vmatpush1.bf16.msra.mxu0 0
    %602 = vmatprep.mubr.bf16.mxu0 0
    %603 = vmatmul.mubr.bf16.gmra.mrb[0].mxu0 %v569
    %v604 = vpop.f32.mrb[0].mxu0
    %v605 = vadd.f32 0.0, %v604
    %v606 = vpop.f32.mrb[0].mxu0
    %v607 = vadd.f32 0.0, %v606
    %v608 = vpop.f32.mrb[0].mxu0
    %v609 = vpop.f32.mrb[0].mxu0
    %610 = vdwg.mxu0
    %611 = vmatprep.subr.bf16.mxu0 0
    %612 = vmatpush1.bf16.msra.mxu0 %v186
    %613 = vmatprep.subr.bf16.mxu0 0
    %614 = vmatpush1.bf16.msra.mxu0 %v189
    %615 = vmatprep.subr.bf16.mxu0 0
    %616 = vmatpush1.bf16.msra.mxu0 %v192
    %617 = vmatprep.subr.bf16.mxu0 0
    %618 = vmatpush1.bf16.msra.mxu0 %v195
    %619 = vmatprep.subr.bf16.mxu0 0
    %620 = vmatpush1.bf16.msra.mxu0 %v198
    %621 = vmatprep.subr.bf16.mxu0 0
    %622 = vmatpush1.bf16.msra.mxu0 %v201
    %623 = vmatprep.subr.bf16.mxu0 0
    %624 = vmatpush1.bf16.msra.mxu0 %v204
    %625 = vmatprep.subr.bf16.mxu0 0
    %626 = vmatpush1.bf16.msra.mxu0 %v207
    %627 = vmatprep.subr.bf16.mxu0 0
    %628 = vmatpush1.bf16.msra.mxu0 0
    %629 = vmatprep.subr.bf16.mxu0 0
    %630 = vmatpush1.bf16.msra.mxu0 0
    %631 = vmatprep.subr.bf16.mxu0 0
    %632 = vmatpush1.bf16.msra.mxu0 0
    %633 = vmatprep.subr.bf16.mxu0 0
    %634 = vmatpush1.bf16.msra.mxu0 0
    %635 = vmatprep.subr.bf16.mxu0 0
    %636 = vmatpush1.bf16.msra.mxu0 0
    %637 = vmatprep.subr.bf16.mxu0 0
    %638 = vmatpush1.bf16.msra.mxu0 0
    %639 = vmatprep.subr.bf16.mxu0 0
    %640 = vmatpush1.bf16.msra.mxu0 0
    %641 = vmatprep.subr.bf16.mxu0 0
    %642 = vmatpush1.bf16.msra.mxu0 0
    %643 = vmatprep.mubr.bf16.mxu0 0
    %644 = vmatmul.mubr.bf16.gmra.mrb[0].mxu0 %v569
    %v645 = vpop.f32.mrb[0].mxu0
    %v646 = vadd.f32 0.0, %v645
    %v647 = vpop.f32.mrb[0].mxu0
    %v648 = vpop.f32.mrb[0].mxu0
    %v649 = vpop.f32.mrb[0].mxu0
    %650 = vdwg.mxu0
    %v651 = vadd.f32 %v566, %v605
    %v652 = vxor.u32 %v651, 2147483648
    %v653 = vmul.f32 %v652, 1.442695
    %v654 = vpow.pop %v653
    %v655 = vadd.f32 %v654, 1.0
    %v656 = vrcp.pop %v655
    %v657 = vmul.f32 1.0, %v656
    %v658 = vadd.f32 %v567, %v607
    %v659 = vxor.u32 %v658, 2147483648
    %v660 = vmul.f32 %v659, 1.442695
    %v661 = vpow.pop %v660
    %v662 = vadd.f32 %v661, 1.0
    %v663 = vrcp.pop %v662
    %v664 = vmul.f32 1.0, %v663
    %v665 = vadd.f32 %v646, %v331
    %v666 = vmul.f32 %v657, %v665
    %v667 = vadd.f32 %v568, %v666
    %v668 = vtanh.pop %v667
    %v669 = vsub.f32 %v560, %v668
    %v670 = vmul.f32 %v664, %v669
    %v671 = vadd.f32 %v668, %v670
    %s672 = scalar_lea.vmem [#allocation9], 24
    %673 = vst [vmem:[%s672] sm:$0xff] %v671
    %s674 = scalar_lea.vmem [#allocation3], 48
    %v675 = vld [vmem:[%s674] sm:$0xff]
    %v676 = vld [vmem:[%s674 + $0x8] sm:$0xf]
    %v677 = vunpack.c.l.bf16 %v675
    %v678 = vunpack.c.h.bf16 %v675
    %v679 = vunpack.c.l.bf16 %v676
    %v680 = vpack.c.bf16 %v671, %v671
    %681 = vmatprep.subr.bf16.mxu0 %v185
    %682 = vmatpush1.bf16.msra.mxu0 %v184
    %683 = vmatprep.subr.bf16.mxu0 %v188
    %684 = vmatpush1.bf16.msra.mxu0 %v187
    %685 = vmatprep.subr.bf16.mxu0 %v191
    %686 = vmatpush1.bf16.msra.mxu0 %v190
    %687 = vmatprep.subr.bf16.mxu0 %v194
    %688 = vmatpush1.bf16.msra.mxu0 %v193
    %689 = vmatprep.subr.bf16.mxu0 %v197
    %690 = vmatpush1.bf16.msra.mxu0 %v196
    %691 = vmatprep.subr.bf16.mxu0 %v200
    %692 = vmatpush1.bf16.msra.mxu0 %v199
    %693 = vmatprep.subr.bf16.mxu0 %v203
    %694 = vmatpush1.bf16.msra.mxu0 %v202
    %695 = vmatprep.subr.bf16.mxu0 %v206
    %696 = vmatpush1.bf16.msra.mxu0 %v205
    %697 = vmatprep.subr.bf16.mxu0 0
    %698 = vmatpush1.bf16.msra.mxu0 0
    %699 = vmatprep.subr.bf16.mxu0 0
    %700 = vmatpush1.bf16.msra.mxu0 0
    %701 = vmatprep.subr.bf16.mxu0 0
    %702 = vmatpush1.bf16.msra.mxu0 0
    %703 = vmatprep.subr.bf16.mxu0 0
    %704 = vmatpush1.bf16.msra.mxu0 0
    %705 = vmatprep.subr.bf16.mxu0 0
    %706 = vmatpush1.bf16.msra.mxu0 0
    %707 = vmatprep.subr.bf16.mxu0 0
    %708 = vmatpush1.bf16.msra.mxu0 0
    %709 = vmatprep.subr.bf16.mxu0 0
    %710 = vmatpush1.bf16.msra.mxu0 0
    %711 = vmatprep.subr.bf16.mxu0 0
    %712 = vmatpush1.bf16.msra.mxu0 0
    %713 = vmatprep.mubr.bf16.mxu0 0
    %714 = vmatmul.mubr.bf16.gmra.mrb[0].mxu0 %v680
    %v715 = vpop.f32.mrb[0].mxu0
    %v716 = vadd.f32 0.0, %v715
    %v717 = vpop.f32.mrb[0].mxu0
    %v718 = vadd.f32 0.0, %v717
    %v719 = vpop.f32.mrb[0].mxu0
    %v720 = vpop.f32.mrb[0].mxu0
    %721 = vdwg.mxu0
    %722 = vmatprep.subr.bf16.mxu0 0
    %723 = vmatpush1.bf16.msra.mxu0 %v186
    %724 = vmatprep.subr.bf16.mxu0 0
    %725 = vmatpush1.bf16.msra.mxu0 %v189
    %726 = vmatprep.subr.bf16.mxu0 0
    %727 = vmatpush1.bf16.msra.mxu0 %v192
    %728 = vmatprep.subr.bf16.mxu0 0
    %729 = vmatpush1.bf16.msra.mxu0 %v195
    %730 = vmatprep.subr.bf16.mxu0 0
    %731 = vmatpush1.bf16.msra.mxu0 %v198
    %732 = vmatprep.subr.bf16.mxu0 0
    %733 = vmatpush1.bf16.msra.mxu0 %v201
    %734 = vmatprep.subr.bf16.mxu0 0
    %735 = vmatpush1.bf16.msra.mxu0 %v204
    %736 = vmatprep.subr.bf16.mxu0 0
    %737 = vmatpush1.bf16.msra.mxu0 %v207
    %738 = vmatprep.subr.bf16.mxu0 0
    %739 = vmatpush1.bf16.msra.mxu0 0
    %740 = vmatprep.subr.bf16.mxu0 0
    %741 = vmatpush1.bf16.msra.mxu0 0
    %742 = vmatprep.subr.bf16.mxu0 0
    %743 = vmatpush1.bf16.msra.mxu0 0
    %744 = vmatprep.subr.bf16.mxu0 0
    %745 = vmatpush1.bf16.msra.mxu0 0
    %746 = vmatprep.subr.bf16.mxu0 0
    %747 = vmatpush1.bf16.msra.mxu0 0
    %748 = vmatprep.subr.bf16.mxu0 0
    %749 = vmatpush1.bf16.msra.mxu0 0
    %750 = vmatprep.subr.bf16.mxu0 0
    %751 = vmatpush1.bf16.msra.mxu0 0
    %752 = vmatprep.subr.bf16.mxu0 0
    %753 = vmatpush1.bf16.msra.mxu0 0
    %754 = vmatprep.mubr.bf16.mxu0 0
    %755 = vmatmul.mubr.bf16.gmra.mrb[0].mxu0 %v680
    %v756 = vpop.f32.mrb[0].mxu0
    %v757 = vadd.f32 0.0, %v756
    %v758 = vpop.f32.mrb[0].mxu0
    %v759 = vpop.f32.mrb[0].mxu0
    %v760 = vpop.f32.mrb[0].mxu0
    %761 = vdwg.mxu0
    %v762 = vadd.f32 %v677, %v716
    %v763 = vxor.u32 %v762, 2147483648
    %v764 = vmul.f32 %v763, 1.442695
    %v765 = vpow.pop %v764
    %v766 = vadd.f32 %v765, 1.0
    %v767 = vrcp.pop %v766
    %v768 = vmul.f32 1.0, %v767
    %v769 = vadd.f32 %v678, %v718
    %v770 = vxor.u32 %v769, 2147483648
    %v771 = vmul.f32 %v770, 1.442695
    %v772 = vpow.pop %v771
    %v773 = vadd.f32 %v772, 1.0
    %v774 = vrcp.pop %v773
    %v775 = vmul.f32 1.0, %v774
    %v776 = vadd.f32 %v757, %v331
    %v777 = vmul.f32 %v768, %v776
    %v778 = vadd.f32 %v679, %v777
    %v779 = vtanh.pop %v778
    %v780 = vsub.f32 %v671, %v779
    %v781 = vmul.f32 %v775, %v780
    %v782 = vadd.f32 %v779, %v781
    %s783 = scalar_lea.vmem [#allocation9], 32
    %784 = vst [vmem:[%s783] sm:$0xff] %v782
    %s785 = scalar_lea.vmem [#allocation3], 60
    %v786 = vld [vmem:[%s785] sm:$0xff]
    %v787 = vld [vmem:[%s785 + $0x8] sm:$0xf]
    %v788 = vunpack.c.l.bf16 %v786
    %v789 = vunpack.c.h.bf16 %v786
    %v790 = vunpack.c.l.bf16 %v787
    %v791 = vpack.c.bf16 %v782, %v782
    %792 = vmatprep.subr.bf16.mxu0 %v185
    %793 = vmatpush1.bf16.msra.mxu0 %v184
    %794 = vmatprep.subr.bf16.mxu0 %v188
    %795 = vmatpush1.bf16.msra.mxu0 %v187
    %796 = vmatprep.subr.bf16.mxu0 %v191
    %797 = vmatpush1.bf16.msra.mxu0 %v190
    %798 = vmatprep.subr.bf16.mxu0 %v194
    %799 = vmatpush1.bf16.msra.mxu0 %v193
    %800 = vmatprep.subr.bf16.mxu0 %v197
    %801 = vmatpush1.bf16.msra.mxu0 %v196
    %802 = vmatprep.subr.bf16.mxu0 %v200
    %803 = vmatpush1.bf16.msra.mxu0 %v199
    %804 = vmatprep.subr.bf16.mxu0 %v203
    %805 = vmatpush1.bf16.msra.mxu0 %v202
    %806 = vmatprep.subr.bf16.mxu0 %v206
    %807 = vmatpush1.bf16.msra.mxu0 %v205
    %808 = vmatprep.subr.bf16.mxu0 0
    %809 = vmatpush1.bf16.msra.mxu0 0
    %810 = vmatprep.subr.bf16.mxu0 0
    %811 = vmatpush1.bf16.msra.mxu0 0
    %812 = vmatprep.subr.bf16.mxu0 0
    %813 = vmatpush1.bf16.msra.mxu0 0
    %814 = vmatprep.subr.bf16.mxu0 0
    %815 = vmatpush1.bf16.msra.mxu0 0
    %816 = vmatprep.subr.bf16.mxu0 0
    %817 = vmatpush1.bf16.msra.mxu0 0
    %818 = vmatprep.subr.bf16.mxu0 0
    %819 = vmatpush1.bf16.msra.mxu0 0
    %820 = vmatprep.subr.bf16.mxu0 0
    %821 = vmatpush1.bf16.msra.mxu0 0
    %822 = vmatprep.subr.bf16.mxu0 0
    %823 = vmatpush1.bf16.msra.mxu0 0
    %824 = vmatprep.mubr.bf16.mxu0 0
    %825 = vmatmul.mubr.bf16.gmra.mrb[0].mxu0 %v791
    %v826 = vpop.f32.mrb[0].mxu0
    %v827 = vadd.f32 0.0, %v826
    %v828 = vpop.f32.mrb[0].mxu0
    %v829 = vadd.f32 0.0, %v828
    %v830 = vpop.f32.mrb[0].mxu0
    %v831 = vpop.f32.mrb[0].mxu0
    %832 = vdwg.mxu0
    %833 = vmatprep.subr.bf16.mxu0 0
    %834 = vmatpush1.bf16.msra.mxu0 %v186
    %835 = vmatprep.subr.bf16.mxu0 0
    %836 = vmatpush1.bf16.msra.mxu0 %v189
    %837 = vmatprep.subr.bf16.mxu0 0
    %838 = vmatpush1.bf16.msra.mxu0 %v192
    %839 = vmatprep.subr.bf16.mxu0 0
    %840 = vmatpush1.bf16.msra.mxu0 %v195
    %841 = vmatprep.subr.bf16.mxu0 0
    %842 = vmatpush1.bf16.msra.mxu0 %v198
    %843 = vmatprep.subr.bf16.mxu0 0
    %844 = vmatpush1.bf16.msra.mxu0 %v201
    %845 = vmatprep.subr.bf16.mxu0 0
    %846 = vmatpush1.bf16.msra.mxu0 %v204
    %847 = vmatprep.subr.bf16.mxu0 0
    %848 = vmatpush1.bf16.msra.mxu0 %v207
    %849 = vmatprep.subr.bf16.mxu0 0
    %850 = vmatpush1.bf16.msra.mxu0 0
    %851 = vmatprep.subr.bf16.mxu0 0
    %852 = vmatpush1.bf16.msra.mxu0 0
    %853 = vmatprep.subr.bf16.mxu0 0
    %854 = vmatpush1.bf16.msra.mxu0 0
    %855 = vmatprep.subr.bf16.mxu0 0
    %856 = vmatpush1.bf16.msra.mxu0 0
    %857 = vmatprep.subr.bf16.mxu0 0
    %858 = vmatpush1.bf16.msra.mxu0 0
    %859 = vmatprep.subr.bf16.mxu0 0
    %860 = vmatpush1.bf16.msra.mxu0 0
    %861 = vmatprep.subr.bf16.mxu0 0
    %862 = vmatpush1.bf16.msra.mxu0 0
    %863 = vmatprep.subr.bf16.mxu0 0
    %864 = vmatpush1.bf16.msra.mxu0 0
    %865 = vmatprep.mubr.bf16.mxu0 0
    %866 = vmatmul.mubr.bf16.gmra.mrb[0].mxu0 %v791
    %v867 = vpop.f32.mrb[0].mxu0
    %v868 = vadd.f32 0.0, %v867
    %v869 = vpop.f32.mrb[0].mxu0
    %v870 = vpop.f32.mrb[0].mxu0
    %v871 = vpop.f32.mrb[0].mxu0
    %872 = vdwg.mxu0
    %v873 = vadd.f32 %v788, %v827
    %v874 = vxor.u32 %v873, 2147483648
    %v875 = vmul.f32 %v874, 1.442695
    %v876 = vpow.pop %v875
    %v877 = vadd.f32 %v876, 1.0
    %v878 = vrcp.pop %v877
    %v879 = vmul.f32 1.0, %v878
    %v880 = vadd.f32 %v789, %v829
    %v881 = vxor.u32 %v880, 2147483648
    %v882 = vmul.f32 %v881, 1.442695
    %v883 = vpow.pop %v882
    %v884 = vadd.f32 %v883, 1.0
    %v885 = vrcp.pop %v884
    %v886 = vmul.f32 1.0, %v885
    %v887 = vadd.f32 %v868, %v331
    %v888 = vmul.f32 %v879, %v887
    %v889 = vadd.f32 %v790, %v888
    %v890 = vtanh.pop %v889
    %v891 = vsub.f32 %v782, %v890
    %v892 = vmul.f32 %v886, %v891
    %v893 = vadd.f32 %v890, %v892
    %s894 = scalar_lea.vmem [#allocation9], 40
    %895 = vst [vmem:[%s894] sm:$0xff] %v893
    %s896 = scalar_lea.vmem [#allocation3], 72
    %v897 = vld [vmem:[%s896] sm:$0xff]
    %v898 = vld [vmem:[%s896 + $0x8] sm:$0xf]
    %v899 = vunpack.c.l.bf16 %v897
    %v900 = vunpack.c.h.bf16 %v897
    %v901 = vunpack.c.l.bf16 %v898
    %v902 = vpack.c.bf16 %v893, %v893
    %903 = vmatprep.subr.bf16.mxu0 %v185
    %904 = vmatpush1.bf16.msra.mxu0 %v184
    %905 = vmatprep.subr.bf16.mxu0 %v188
    %906 = vmatpush1.bf16.msra.mxu0 %v187
    %907 = vmatprep.subr.bf16.mxu0 %v191
    %908 = vmatpush1.bf16.msra.mxu0 %v190
    %909 = vmatprep.subr.bf16.mxu0 %v194
    %910 = vmatpush1.bf16.msra.mxu0 %v193
    %911 = vmatprep.subr.bf16.mxu0 %v197
    %912 = vmatpush1.bf16.msra.mxu0 %v196
    %913 = vmatprep.subr.bf16.mxu0 %v200
    %914 = vmatpush1.bf16.msra.mxu0 %v199
    %915 = vmatprep.subr.bf16.mxu0 %v203
    %916 = vmatpush1.bf16.msra.mxu0 %v202
    %917 = vmatprep.subr.bf16.mxu0 %v206
    %918 = vmatpush1.bf16.msra.mxu0 %v205
    %919 = vmatprep.subr.bf16.mxu0 0
    %920 = vmatpush1.bf16.msra.mxu0 0
    %921 = vmatprep.subr.bf16.mxu0 0
    %922 = vmatpush1.bf16.msra.mxu0 0
    %923 = vmatprep.subr.bf16.mxu0 0
    %924 = vmatpush1.bf16.msra.mxu0 0
    %925 = vmatprep.subr.bf16.mxu0 0
    %926 = vmatpush1.bf16.msra.mxu0 0
    %927 = vmatprep.subr.bf16.mxu0 0
    %928 = vmatpush1.bf16.msra.mxu0 0
    %929 = vmatprep.subr.bf16.mxu0 0
    %930 = vmatpush1.bf16.msra.mxu0 0
    %931 = vmatprep.subr.bf16.mxu0 0
    %932 = vmatpush1.bf16.msra.mxu0 0
    %933 = vmatprep.subr.bf16.mxu0 0
    %934 = vmatpush1.bf16.msra.mxu0 0
    %935 = vmatprep.mubr.bf16.mxu0 0
    %936 = vmatmul.mubr.bf16.gmra.mrb[0].mxu0 %v902
    %v937 = vpop.f32.mrb[0].mxu0
    %v938 = vadd.f32 0.0, %v937
    %v939 = vpop.f32.mrb[0].mxu0
    %v940 = vadd.f32 0.0, %v939
    %v941 = vpop.f32.mrb[0].mxu0
    %v942 = vpop.f32.mrb[0].mxu0
    %943 = vdwg.mxu0
    %944 = vmatprep.subr.bf16.mxu0 0
    %945 = vmatpush1.bf16.msra.mxu0 %v186
    %946 = vmatprep.subr.bf16.mxu0 0
    %947 = vmatpush1.bf16.msra.mxu0 %v189
    %948 = vmatprep.subr.bf16.mxu0 0
    %949 = vmatpush1.bf16.msra.mxu0 %v192
    %950 = vmatprep.subr.bf16.mxu0 0
    %951 = vmatpush1.bf16.msra.mxu0 %v195
    %952 = vmatprep.subr.bf16.mxu0 0
    %953 = vmatpush1.bf16.msra.mxu0 %v198
    %954 = vmatprep.subr.bf16.mxu0 0
    %955 = vmatpush1.bf16.msra.mxu0 %v201
    %956 = vmatprep.subr.bf16.mxu0 0
    %957 = vmatpush1.bf16.msra.mxu0 %v204
    %958 = vmatprep.subr.bf16.mxu0 0
    %959 = vmatpush1.bf16.msra.mxu0 %v207
    %960 = vmatprep.subr.bf16.mxu0 0
    %961 = vmatpush1.bf16.msra.mxu0 0
    %962 = vmatprep.subr.bf16.mxu0 0
    %963 = vmatpush1.bf16.msra.mxu0 0
    %964 = vmatprep.subr.bf16.mxu0 0
    %965 = vmatpush1.bf16.msra.mxu0 0
    %966 = vmatprep.subr.bf16.mxu0 0
    %967 = vmatpush1.bf16.msra.mxu0 0
    %968 = vmatprep.subr.bf16.mxu0 0
    %969 = vmatpush1.bf16.msra.mxu0 0
    %970 = vmatprep.subr.bf16.mxu0 0
    %971 = vmatpush1.bf16.msra.mxu0 0
    %972 = vmatprep.subr.bf16.mxu0 0
    %973 = vmatpush1.bf16.msra.mxu0 0
    %974 = vmatprep.subr.bf16.mxu0 0
    %975 = vmatpush1.bf16.msra.mxu0 0
    %976 = vmatprep.mubr.bf16.mxu0 0
    %977 = vmatmul.mubr.bf16.gmra.mrb[0].mxu0 %v902
    %v978 = vpop.f32.mrb[0].mxu0
    %v979 = vadd.f32 0.0, %v978
    %v980 = vpop.f32.mrb[0].mxu0
    %v981 = vpop.f32.mrb[0].mxu0
    %v982 = vpop.f32.mrb[0].mxu0
    %983 = vdwg.mxu0
    %v984 = vadd.f32 %v899, %v938
    %v985 = vxor.u32 %v984, 2147483648
    %v986 = vmul.f32 %v985, 1.442695
    %v987 = vpow.pop %v986
    %v988 = vadd.f32 %v987, 1.0
    %v989 = vrcp.pop %v988
    %v990 = vmul.f32 1.0, %v989
    %v991 = vadd.f32 %v900, %v940
    %v992 = vxor.u32 %v991, 2147483648
    %v993 = vmul.f32 %v992, 1.442695
    %v994 = vpow.pop %v993
    %v995 = vadd.f32 %v994, 1.0
    %v996 = vrcp.pop %v995
    %v997 = vmul.f32 1.0, %v996
    %v998 = vadd.f32 %v979, %v331
    %v999 = vmul.f32 %v990, %v998
    %v1000 = vadd.f32 %v901, %v999
    %v1001 = vtanh.pop %v1000
    %v1002 = vsub.f32 %v893, %v1001
    %v1003 = vmul.f32 %v997, %v1002
    %v1004 = vadd.f32 %v1001, %v1003
    %s1005 = scalar_lea.vmem [#allocation9], 48
    %1006 = vst [vmem:[%s1005] sm:$0xff] %v1004
    %s1007 = scalar_lea.vmem [#allocation3], 84
    %v1008 = vld [vmem:[%s1007] sm:$0xff]
    %v1009 = vld [vmem:[%s1007 + $0x8] sm:$0xf]
    %v1010 = vunpack.c.l.bf16 %v1008
    %v1011 = vunpack.c.h.bf16 %v1008
    %v1012 = vunpack.c.l.bf16 %v1009
    %v1013 = vpack.c.bf16 %v1004, %v1004
    %1014 = vmatprep.subr.bf16.mxu0 %v185
    %1015 = vmatpush1.bf16.msra.mxu0 %v184
    %1016 = vmatprep.subr.bf16.mxu0 %v188
    %1017 = vmatpush1.bf16.msra.mxu0 %v187
    %1018 = vmatprep.subr.bf16.mxu0 %v191
    %1019 = vmatpush1.bf16.msra.mxu0 %v190
    %1020 = vmatprep.subr.bf16.mxu0 %v194
    %1021 = vmatpush1.bf16.msra.mxu0 %v193
    %1022 = vmatprep.subr.bf16.mxu0 %v197
    %1023 = vmatpush1.bf16.msra.mxu0 %v196
    %1024 = vmatprep.subr.bf16.mxu0 %v200
    %1025 = vmatpush1.bf16.msra.mxu0 %v199
    %1026 = vmatprep.subr.bf16.mxu0 %v203
    %1027 = vmatpush1.bf16.msra.mxu0 %v202
    %1028 = vmatprep.subr.bf16.mxu0 %v206
    %1029 = vmatpush1.bf16.msra.mxu0 %v205
    %1030 = vmatprep.subr.bf16.mxu0 0
    %1031 = vmatpush1.bf16.msra.mxu0 0
    %1032 = vmatprep.subr.bf16.mxu0 0
    %1033 = vmatpush1.bf16.msra.mxu0 0
    %1034 = vmatprep.subr.bf16.mxu0 0
    %1035 = vmatpush1.bf16.msra.mxu0 0
    %1036 = vmatprep.subr.bf16.mxu0 0
    %1037 = vmatpush1.bf16.msra.mxu0 0
    %1038 = vmatprep.subr.bf16.mxu0 0
    %1039 = vmatpush1.bf16.msra.mxu0 0
    %1040 = vmatprep.subr.bf16.mxu0 0
    %1041 = vmatpush1.bf16.msra.mxu0 0
    %1042 = vmatprep.subr.bf16.mxu0 0
    %1043 = vmatpush1.bf16.msra.mxu0 0
    %1044 = vmatprep.subr.bf16.mxu0 0
    %1045 = vmatpush1.bf16.msra.mxu0 0
    %1046 = vmatprep.mubr.bf16.mxu0 0
    %1047 = vmatmul.mubr.bf16.gmra.mrb[0].mxu0 %v1013
    %v1048 = vpop.f32.mrb[0].mxu0
    %v1049 = vadd.f32 0.0, %v1048
    %v1050 = vpop.f32.mrb[0].mxu0
    %v1051 = vadd.f32 0.0, %v1050
    %v1052 = vpop.f32.mrb[0].mxu0
    %v1053 = vpop.f32.mrb[0].mxu0
    %1054 = vdwg.mxu0
    %1055 = vmatprep.subr.bf16.mxu0 0
    %1056 = vmatpush1.bf16.msra.mxu0 %v186
    %1057 = vmatprep.subr.bf16.mxu0 0
    %1058 = vmatpush1.bf16.msra.mxu0 %v189
    %1059 = vmatprep.subr.bf16.mxu0 0
    %1060 = vmatpush1.bf16.msra.mxu0 %v192
    %1061 = vmatprep.subr.bf16.mxu0 0
    %1062 = vmatpush1.bf16.msra.mxu0 %v195
    %1063 = vmatprep.subr.bf16.mxu0 0
    %1064 = vmatpush1.bf16.msra.mxu0 %v198
    %1065 = vmatprep.subr.bf16.mxu0 0
    %1066 = vmatpush1.bf16.msra.mxu0 %v201
    %1067 = vmatprep.subr.bf16.mxu0 0
    %1068 = vmatpush1.bf16.msra.mxu0 %v204
    %1069 = vmatprep.subr.bf16.mxu0 0
    %1070 = vmatpush1.bf16.msra.mxu0 %v207
    %1071 = vmatprep.subr.bf16.mxu0 0
    %1072 = vmatpush1.bf16.msra.mxu0 0
    %1073 = vmatprep.subr.bf16.mxu0 0
    %1074 = vmatpush1.bf16.msra.mxu0 0
    %1075 = vmatprep.subr.bf16.mxu0 0
    %1076 = vmatpush1.bf16.msra.mxu0 0
    %1077 = vmatprep.subr.bf16.mxu0 0
    %1078 = vmatpush1.bf16.msra.mxu0 0
    %1079 = vmatprep.subr.bf16.mxu0 0
    %1080 = vmatpush1.bf16.msra.mxu0 0
    %1081 = vmatprep.subr.bf16.mxu0 0
    %1082 = vmatpush1.bf16.msra.mxu0 0
    %1083 = vmatprep.subr.bf16.mxu0 0
    %1084 = vmatpush1.bf16.msra.mxu0 0
    %1085 = vmatprep.subr.bf16.mxu0 0
    %1086 = vmatpush1.bf16.msra.mxu0 0
    %1087 = vmatprep.mubr.bf16.mxu0 0
    %1088 = vmatmul.mubr.bf16.gmra.mrb[0].mxu0 %v1013
    %v1089 = vpop.f32.mrb[0].mxu0
    %v1090 = vadd.f32 0.0, %v1089
    %v1091 = vpop.f32.mrb[0].mxu0
    %v1092 = vpop.f32.mrb[0].mxu0
    %v1093 = vpop.f32.mrb[0].mxu0
    %1094 = vdwg.mxu0
    %v1095 = vadd.f32 %v1010, %v1049
    %v1096 = vxor.u32 %v1095, 2147483648
    %v1097 = vmul.f32 %v1096, 1.442695
    %v1098 = vpow.pop %v1097
    %v1099 = vadd.f32 %v1098, 1.0
    %v1100 = vrcp.pop %v1099
    %v1101 = vmul.f32 1.0, %v1100
    %v1102 = vadd.f32 %v1011, %v1051
    %v1103 = vxor.u32 %v1102, 2147483648
    %v1104 = vmul.f32 %v1103, 1.442695
    %v1105 = vpow.pop %v1104
    %v1106 = vadd.f32 %v1105, 1.0
    %v1107 = vrcp.pop %v1106
    %v1108 = vmul.f32 1.0, %v1107
    %v1109 = vadd.f32 %v1090, %v331
    %v1110 = vmul.f32 %v1101, %v1109
    %v1111 = vadd.f32 %v1012, %v1110
    %v1112 = vtanh.pop %v1111
    %v1113 = vsub.f32 %v1004, %v1112
    %v1114 = vmul.f32 %v1108, %v1113
    %v1115 = vadd.f32 %v1112, %v1114
    %s1116 = scalar_lea.vmem [#allocation9], 56
    %1117 = vst [vmem:[%s1116] sm:$0xff] %v1115
    %1118 = vst [vmem:[#allocation2] sm:$0xff] %v1115
    // Predicated region
    $region34: #{tpu_custom_call.1} parent=1 // pred_check
      _
    $region35: #{tpu_custom_call.1} parent=1 // pred_check_branch
      %1120 = sbr.rel (0) target = $region37
    $region36: #{tpu_custom_call.1} parent=1 // pred_region
      %s1122 = ssub.s32 1024, 1024
      %1123 = vsyncadd [#allocation5], %s1122
      %s1124 = sshll.u32 [#allocation9], 4
      %s1125 = int_to_ptr.vmem [resolvable:$true] %s1124
      %1130 = dma.vmem_to_hbm [thread:$0]  %s1125, 1024, %s4, [#allocation5], 128, 128, 8
    $region37: #{tpu_custom_call.1} parent=1 // pred_fallthru
      _
    // Predicated region
    $region38: #{tpu_custom_call.1} parent=1 // pred_check
      _
    $region39: #{tpu_custom_call.1} parent=1 // pred_check_branch
      %1132 = sbr.rel (0) target = $region41
    $region40: #{tpu_custom_call.1} parent=1 // pred_region
      %1133 = dma.done [#allocation5], 1024
    $region41: #{tpu_custom_call.1} parent=1 // pred_fallthru
      _
    %1134 = vsyncpa [#allocation4], 1
    %1135 = vsyncpa [#allocation7], 1
    %1136 = vsyncpa [#allocation5], 1

</llo_original>
